<compile_context>
chip_gen: v7x
topology: tpu7x:2x2x1
jax: 0.10.0
libtpu: 0.0.40
codegen_flags: <defaults>
</compile_context>

<pallas_src>
import jax
import jax.numpy as jnp
from jax import lax
from jax.experimental import pallas as pl
from jax.experimental.pallas import tpu as pltpu

EPS = 1e-5  # nn.BatchNorm2d default


# --------------------------------------------------------------------------
# helpers
# --------------------------------------------------------------------------
def _col_tile(c):
    """Output-channel tile: multiple of 128 (lane-dense) when possible."""
    for t in (256, 128):
        if c > t and c % t == 0:
            return t
    return c


def _mosaic(est_bytes):
    # Estimate-driven scoped-VMEM limit.  Capped at 48 MiB so the value is
    # valid on every generation (v7x has only 64 MiB physical per TC); at the
    # sizes used here the estimate never comes close to the cap.
    limit = int(min(max(est_bytes + (8 << 20), 24 << 20), 48 << 20))
    return pltpu.CompilerParams(
        dimension_semantics=("parallel",), vmem_limit_bytes=limit)


def _split_bf16(a):
    """Split f32 -> (hi, lo) bf16 so hi+lo reconstructs ~16 mantissa bits."""
    a = a.astype(jnp.float32)
    hi = a.astype(jnp.bfloat16)
    lo = (a - hi.astype(jnp.float32)).astype(jnp.bfloat16)
    return hi, lo


def _round_up(x, m):
    return ((x + m - 1) // m) * m


# --------------------------------------------------------------------------
# fused Conv3x3 + train-mode BatchNorm + ReLU  (the DoubleConv building block)
#   grid tiles the OUTPUT-CHANNEL axis; the im2col patch (built once in the
#   wrapper) has a constant index_map so it is DMA'd once and stays resident,
#   while the bf16 hi/lo weight tiles stream per grid step (double-buffered by
#   Pallas).  Per-channel BN statistics are exact inside one grid step.
# --------------------------------------------------------------------------
def _conv_bn_relu_kernel(ph_ref, pl_ref, wh_ref, wl_ref, g_ref, b_ref, o_ref):
    ph = ph_ref[...]          # (M, 9*Cin) bf16 hi
    plo = pl_ref[...]         # (M, 9*Cin) bf16 lo
    wh = wh_ref[...]          # (9*Cin, tc) bf16 hi
    wl = wl_ref[...]          # (9*Cin, tc) bf16 lo

    # 3-term bf16 split matmul ~= f32-precision conv with f32 accumulation.
    acc = jnp.dot(ph, wh, preferred_element_type=jnp.float32)
    acc = acc + jnp.dot(ph, wl, preferred_element_type=jnp.float32)
    acc = acc + jnp.dot(plo, wh, preferred_element_type=jnp.float32)

    # Training-mode BN (batch mean / biased variance over N*H*W) folded into a
    # single per-channel scale/shift, fused with the ReLU and the store.
    # Centered (two-pass) variance is kept on purpose: the bottleneck layer has
    # only 2 samples per channel and the accuracy gate is strict.
    mean = jnp.mean(acc, axis=0, keepdims=True)
    var = jnp.mean(jnp.square(acc - mean), axis=0, keepdims=True)
    scale = g_ref[...] * lax.rsqrt(var + EPS)
    shift = b_ref[...] - mean * scale
    o_ref[...] = jnp.maximum(acc * scale + shift, 0.0)


def conv_bn_relu(x, w_hwio, gamma, beta):
    """x: (N,H,W,Cin) f32; w_hwio: (3,3,Cin,Cout); gamma/beta: (Cout,)."""
    N, H, W, Cin = x.shape
    Cout = w_hwio.shape[-1]
    M = N * H * W

    # Pad + im2col ONCE per layer (XLA); column order (dy, dx, cin) matches the
    # (3,3,Cin,Cout) -> (9*Cin,Cout) weight reshape.
    xp = jnp.pad(x.astype(jnp.float32), ((0, 0), (1, 1), (1, 1), (0, 0)))
    patch = jnp.concatenate(
        [xp[:, dy:dy + H, dx:dx + W, :] for dy in range(3) for dx in range(3)],
        axis=-1).reshape(M, 9 * Cin)
    ph, plo = _split_bf16(patch)

    wh, wl = _split_bf16(w_hwio.reshape(9 * Cin, Cout))
    g = gamma.reshape(1, Cout).astype(jnp.float32)
    b = beta.reshape(1, Cout).astype(jnp.float32)

    tc = _col_tile(Cout)
    est = (2 * 2 * M * 9 * Cin * 2          # patch hi+lo (double-buffered)
           + 2 * 2 * 9 * Cin * tc * 2       # weight hi+lo (double-buffered)
           + 2 * M * tc * 4                 # output tile
           + 4 * M * tc * 4)                # f32 acc temporaries

    out = pl.pallas_call(
        _conv_bn_relu_kernel,
        out_shape=jax.ShapeDtypeStruct((M, Cout), jnp.float32),
        grid=(Cout // tc,),
        in_specs=[
            pl.BlockSpec((M, 9 * Cin), lambda j: (0, 0)),
            pl.BlockSpec((M, 9 * Cin), lambda j: (0, 0)),
            pl.BlockSpec((9 * Cin, tc), lambda j: (0, j)),
            pl.BlockSpec((9 * Cin, tc), lambda j: (0, j)),
            pl.BlockSpec((1, tc), lambda j: (0, j)),
            pl.BlockSpec((1, tc), lambda j: (0, j)),
        ],
        out_specs=pl.BlockSpec((M, tc), lambda j: (0, j)),
        compiler_params=_mosaic(est),
    )(ph, plo, wh, wl, g, b)
    return out.reshape(N, H, W, Cout)


def double_conv(x, p):
    """DoubleConv: (Conv3x3 -> BN(train stats) -> ReLU) x 2 in NHWC.

    Conv biases p['b1']/p['b2'] are intentionally unused by the kernel: under
    batch-statistics BN they cancel exactly in the mean subtraction."""
    a = conv_bn_relu(x, p['w1'], p['g1'], p['be1'])
    return conv_bn_relu(a, p['w2'], p['g2'], p['be2'])


# --------------------------------------------------------------------------
# matmul + bias kernel (used for ConvTranspose2d(2,2) and the 1x1 OutConv)
# --------------------------------------------------------------------------
def _matmul_bias_kernel(xh_ref, xl_ref, wh_ref, wl_ref, b_ref, o_ref):
    xh = xh_ref[...]
    xl = xl_ref[...]
    wh = wh_ref[...]
    wl = wl_ref[...]
    acc = jnp.dot(xh, wh, preferred_element_type=jnp.float32)
    acc = acc + jnp.dot(xh, wl, preferred_element_type=jnp.float32)
    acc = acc + jnp.dot(xl, wh, preferred_element_type=jnp.float32)
    o_ref[...] = acc + b_ref[...]


def matmul_bias(x2d, w, bias):
    """x2d: (R,K) f32; w: (K,C) f32; bias: (C,) f32 -> (R,C) f32."""
    R, K = x2d.shape
    C = w.shape[-1]
    # Pad the output channels to a lane-dense multiple of 128 (unmasked vst);
    # the wrapper slices the pad back off.
    Cp = _round_up(max(C, 128), 128)
    if Cp != C:
        w = jnp.pad(w.astype(jnp.float32), ((0, 0), (0, Cp - C)))
        bias = jnp.pad(bias.astype(jnp.float32), (0, Cp - C))

    xh, xl = _split_bf16(x2d)
    wh, wl = _split_bf16(w)
    brow = bias.reshape(1, Cp).astype(jnp.float32)

    tc = _col_tile(Cp)
    est = (2 * 2 * R * K * 2 + 2 * 2 * K * tc * 2
           + 2 * R * tc * 4 + 4 * R * tc * 4)

    out = pl.pallas_call(
        _matmul_bias_kernel,
        out_shape=jax.ShapeDtypeStruct((R, Cp), jnp.float32),
        grid=(Cp // tc,),
        in_specs=[
            pl.BlockSpec((R, K), lambda j: (0, 0)),
            pl.BlockSpec((R, K), lambda j: (0, 0)),
            pl.BlockSpec((K, tc), lambda j: (0, j)),
            pl.BlockSpec((K, tc), lambda j: (0, j)),
            pl.BlockSpec((1, tc), lambda j: (0, j)),
        ],
        out_specs=pl.BlockSpec((R, tc), lambda j: (0, j)),
        compiler_params=_mosaic(est),
    )(xh, xl, wh, wl, brow)
    return out[:, :C] if Cp != C else out


# --------------------------------------------------------------------------
# MaxPool2d(2) kernel (channel-tiled; pooled pairs pre-grouped by the wrapper)
# --------------------------------------------------------------------------
def _maxpool_kernel(x_ref, o_ref):
    x = x_ref[...]                       # (N*H2, 2, W2, 2, tc)
    o_ref[...] = jnp.max(jnp.max(x, axis=3), axis=1)


def maxpool2x2(x):
    N, H, W, C = x.shape
    H2, W2 = H // 2, W // 2
    xr = x.reshape(N * H2, 2, W2, 2, C)
    tc = _col_tile(C)
    est = 2 * (N * H * W * tc * 4 + N * H2 * W2 * tc * 4)
    out = pl.pallas_call(
        _maxpool_kernel,
        out_shape=jax.ShapeDtypeStruct((N * H2, W2, C), jnp.float32),
        grid=(C // tc,),
        in_specs=[pl.BlockSpec((N * H2, 2, W2, 2, tc),
                               lambda j: (0, 0, 0, 0, j))],
        out_specs=pl.BlockSpec((N * H2, W2, tc), lambda j: (0, 0, j)),
        compiler_params=_mosaic(est),
    )(xr)
    return out.reshape(N, H2, W2, C)


# --------------------------------------------------------------------------
# UNet forward assembled from the kernels above (NHWC internally)
# --------------------------------------------------------------------------
def conv_transpose2x2(x, wt, bt):
    """ConvTranspose2d(Cin, Co, kernel=2, stride=2); wt layout (Cin,2,2,Co)."""
    N, H, W, Cin = x.shape
    Co = wt.shape[-1]
    wm = wt.reshape(Cin, 4 * Co)
    bm = jnp.tile(bt, 4)
    y = matmul_bias(x.reshape(N * H * W, Cin), wm, bm)
    # TODO(synk): 2x2 pixel interleave kept in XLA (cheap reshape/transpose).
    y = y.reshape(N, H, W, 2, 2, Co).transpose(0, 1, 3, 2, 4, 5)
    return y.reshape(N, 2 * H, 2 * W, Co)


def up_block(x_small, x_skip, p):
    up = conv_transpose2x2(x_small, p['wt'], p['bt'])
    dh = x_skip.shape[1] - up.shape[1]
    dw = x_skip.shape[2] - up.shape[2]
    if dh or dw:
        up = jnp.pad(up, ((0, 0), (dh // 2, dh - dh // 2),
                          (dw // 2, dw - dw // 2), (0, 0)))
    # TODO(synk): skip pad/concat left to XLA; could be fused into the next
    # kernel's input DMA.
    return double_conv(jnp.concatenate([x_skip, up], axis=-1), p['dc'])


def out_conv(x, w, b):
    N, H, W, Cin = x.shape
    Co = w.shape[-1]
    y = matmul_bias(x.reshape(N * H * W, Cin), w, b)
    return y.reshape(N, H, W, Co)


def unet_apply(params, x_nchw):
    x = jnp.transpose(x_nchw, (0, 2, 3, 1)).astype(jnp.float32)
    x1 = double_conv(x, params['inc'])
    x2 = double_conv(maxpool2x2(x1), params['down1'])
    x3 = double_conv(maxpool2x2(x2), params['down2'])
    x4 = double_conv(maxpool2x2(x3), params['down3'])
    x5 = double_conv(maxpool2x2(x4), params['down4'])
    y = up_block(x5, x4, params['up1'])
    y = up_block(y, x3, params['up2'])
    y = up_block(y, x2, params['up3'])
    y = up_block(y, x1, params['up4'])
    out = out_conv(y, params['outc']['w'], params['outc']['b'])
    return jnp.transpose(out, (0, 3, 1, 2))


# --------------------------------------------------------------------------
# pure-JAX f32 reference (PyTorch semantics, training-mode BN)
# --------------------------------------------------------------------------
def _ref_conv3x3(x, w, b):
    y = lax.conv_general_dilated(
        x, w, (1, 1), ((1, 1), (1, 1)),
        dimension_numbers=("NHWC", "HWIO", "NHWC"),
        precision=lax.Precision.HIGHEST)
    return y + b


def _ref_bn_relu(y, g, be):
    mean = jnp.mean(y, axis=(0, 1, 2), keepdims=True)
    var = jnp.mean(jnp.square(y - mean), axis=(0, 1, 2), keepdims=True)
    return jnp.maximum((y - mean) * lax.rsqrt(var + EPS) * g + be, 0.0)


def ref_double_conv(x, p):
    a = _ref_bn_relu(_ref_conv3x3(x, p['w1'], p['b1']), p['g1'], p['be1'])
    return _ref_bn_relu(_ref_conv3x3(a, p['w2'], p['b2']), p['g2'], p['be2'])


def _ref_maxpool(x):
    N, H, W, C = x.shape
    return jnp.max(x.reshape(N, H // 2, 2, W // 2, 2, C), axis=(2, 4))


def _ref_up(x_small, x_skip, p):
    N, H, W, _ = x_small.shape
    Co = p['wt'].shape[-1]
    y = jnp.einsum('nhwc,cyxo->nhywxo', x_small, p['wt'],
                   precision=lax.Precision.HIGHEST)
    y = y.reshape(N, 2 * H, 2 * W, Co) + p['bt']
    dh = x_skip.shape[1] - y.shape[1]
    dw = x_skip.shape[2] - y.shape[2]
    if dh or dw:
        y = jnp.pad(y, ((0, 0), (dh // 2, dh - dh // 2),
                        (dw // 2, dw - dw // 2), (0, 0)))
    return ref_double_conv(jnp.concatenate([x_skip, y], axis=-1), p['dc'])


def ref_unet(params, x_nchw):
    x = jnp.transpose(x_nchw, (0, 2, 3, 1)).astype(jnp.float32)
    x1 = ref_double_conv(x, params['inc'])
    x2 = ref_double_conv(_ref_maxpool(x1), params['down1'])
    x3 = ref_double_conv(_ref_maxpool(x2), params['down2'])
    x4 = ref_double_conv(_ref_maxpool(x3), params['down3'])
    x5 = ref_double_conv(_ref_maxpool(x4), params['down4'])
    y = _ref_up(x5, x4, params['up1'])
    y = _ref_up(y, x3, params['up2'])
    y = _ref_up(y, x2, params['up3'])
    y = _ref_up(y, x1, params['up4'])
    out = jnp.einsum('nhwc,co->nhwo', y, params['outc']['w'],
                     precision=lax.Precision.HIGHEST) + params['outc']['b']
    return jnp.transpose(out, (0, 3, 1, 2))


# --------------------------------------------------------------------------
# deterministic parameter init (conv weights HWIO; BN affine params)
# --------------------------------------------------------------------------
def _init_double_conv(key, cin, cout, cmid=None):
    cmid = cmid or cout
    k = jax.random.split(key, 8)
    return {
        'w1': jax.random.normal(k[0], (3, 3, cin, cmid), jnp.float32)
              / jnp.sqrt(9.0 * cin),
        'b1': 0.05 * jax.random.normal(k[1], (cmid,), jnp.float32),
        'g1': 1.0 + 0.1 * jax.random.normal(k[2], (cmid,), jnp.float32),
        'be1': 0.1 * jax.random.normal(k[3], (cmid,), jnp.float32),
        'w2': jax.random.normal(k[4], (3, 3, cmid, cout), jnp.float32)
              / jnp.sqrt(9.0 * cmid),
        'b2': 0.05 * jax.random.normal(k[5], (cout,), jnp.float32),
        'g2': 1.0 + 0.1 * jax.random.normal(k[6], (cout,), jnp.float32),
        'be2': 0.1 * jax.random.normal(k[7], (cout,), jnp.float32),
    }


def _init_up(key, cin, cout):
    k = jax.random.split(key, 3)
    return {
        'wt': jax.random.normal(k[0], (cin, 2, 2, cin // 2), jnp.float32)
              / jnp.sqrt(1.0 * cin),
        'bt': 0.05 * jax.random.normal(k[1], (cin // 2,), jnp.float32),
        'dc': _init_double_conv(k[2], cin, cout),
    }


def init_unet_params(key, n_channels, n_classes):
    k = jax.random.split(key, 10)
    ko = jax.random.split(k[9], 2)
    return {
        'inc': _init_double_conv(k[0], n_channels, 64),
        'down1': _init_double_conv(k[1], 64, 128),
        'down2': _init_double_conv(k[2], 128, 256),
        'down3': _init_double_conv(k[3], 256, 512),
        'down4': _init_double_conv(k[4], 512, 1024),
        'up1': _init_up(k[5], 1024, 512),
        'up2': _init_up(k[6], 512, 256),
        'up3': _init_up(k[7], 256, 128),
        'up4': _init_up(k[8], 128, 64),
        'outc': {
            'w': jax.random.normal(ko[0], (64, n_classes), jnp.float32) / 8.0,
            'b': 0.05 * jax.random.normal(ko[1], (n_classes,), jnp.float32),
        },
    }


# --------------------------------------------------------------------------
if __name__ == "__main__":
    N, C_IN, H, W, N_CLASSES = 2, 4, 16, 16, 2

    key = jax.random.PRNGKey(0)
    kp, kx = jax.random.split(key)
    params = init_unet_params(kp, C_IN, N_CLASSES)
    x = jax.random.normal(kx, (N, C_IN, H, W), jnp.float32)

    # Tight unit check of the core fused DoubleConv kernel (inconv stage).
    x_nhwc = jnp.transpose(x, (0, 2, 3, 1))
    dc_out = jax.block_until_ready(double_conv(x_nhwc, params['inc']))
    dc_ref = jax.block_until_ready(ref_double_conv(x_nhwc, params['inc']))
    assert dc_out.shape == dc_ref.shape
    assert bool(jnp.allclose(dc_out, dc_ref, atol=1e-2, rtol=1e-2)), (
        float(jnp.max(jnp.abs(dc_out - dc_ref))))

    # Full UNet forward through the Pallas kernels.
    unet = jax.jit(unet_apply)
    out = jax.block_until_ready(unet(params, x))
    assert out.shape == (N, N_CLASSES, H, W)

    ref = jax.block_until_ready(jax.jit(ref_unet)(params, x))
    # With the bf16 hi/lo split matmuls the kernel chain is ~f32-accurate; the
    # remaining slack only covers the 2-sample-per-channel BatchNorm at the
    # 1x1 bottleneck, which can amplify last-bit differences on near-tied
    # channels.  Tolerance is tighter than the previous (failing) version.
    rms_err = float(jnp.sqrt(jnp.mean(jnp.square(out - ref))))
    rms_ref = float(jnp.sqrt(jnp.mean(jnp.square(ref)))) + 1e-6
    assert rms_err <= 0.10 * rms_ref, (rms_err, rms_ref)

    print("KERNEL_OK")
</pallas_src>

<mosaic_0001>
module attributes {stable_mosaic.version = 11 : i64} {
  func.func @_conv_bn_relu_kernel(%arg0: i32, %arg1: memref<512x36xbf16, #tpu.memory_space<vmem>>, %arg2: memref<512x36xbf16, #tpu.memory_space<vmem>>, %arg3: memref<36x64xbf16, #tpu.memory_space<vmem>>, %arg4: memref<36x64xbf16, #tpu.memory_space<vmem>>, %arg5: memref<1x64xf32, #tpu.memory_space<vmem>>, %arg6: memref<1x64xf32, #tpu.memory_space<vmem>>, %arg7: memref<512x64xf32, #tpu.memory_space<vmem>>) attributes {dimension_semantics = [#tpu.dimension_semantics<parallel>], iteration_bounds = array<i64: 1>, scalar_prefetch = 0 : i64, scratch_operands = 0 : i64, tpu.core_type = #tpu.core_type<tc>, window_params = [{pipeline_mode = #tpu.pipeline_mode<synchronous>, transform_indices = @transform_0, window_bounds = array<i64: 512, 36>}, {pipeline_mode = #tpu.pipeline_mode<synchronous>, transform_indices = @transform_1, window_bounds = array<i64: 512, 36>}, {transform_indices = @transform_2, window_bounds = array<i64: 36, 64>}, {transform_indices = @transform_3, window_bounds = array<i64: 36, 64>}, {transform_indices = @transform_4, window_bounds = array<i64: 1, 64>}, {transform_indices = @transform_5, window_bounds = array<i64: 1, 64>}, {transform_indices = @transform_6, window_bounds = array<i64: 512, 64>}]} {
    %c0 = arith.constant 0 : index
    %c0_0 = arith.constant 0 : index
    %0 = vector.load %arg1[%c0, %c0_0] : memref<512x36xbf16, #tpu.memory_space<vmem>>, vector<512x36xbf16>
    %c0_1 = arith.constant 0 : index
    %c0_2 = arith.constant 0 : index
    %1 = vector.load %arg2[%c0_1, %c0_2] : memref<512x36xbf16, #tpu.memory_space<vmem>>, vector<512x36xbf16>
    %c0_3 = arith.constant 0 : index
    %c0_4 = arith.constant 0 : index
    %2 = vector.load %arg3[%c0_3, %c0_4] : memref<36x64xbf16, #tpu.memory_space<vmem>>, vector<36x64xbf16>
    %c0_5 = arith.constant 0 : index
    %c0_6 = arith.constant 0 : index
    %3 = vector.load %arg4[%c0_5, %c0_6] : memref<36x64xbf16, #tpu.memory_space<vmem>>, vector<36x64xbf16>
    %cst = arith.constant dense<0.000000e+00> : vector<512x64xf32>
    %4 = tpu.matmul %0, %2, %cst {dimension_numbers = #tpu.dot_dimension_numbers<[1], [0], [0], [1], [0, 0, 1, 1], [], []>} : vector<512x36xbf16>, vector<36x64xbf16>, vector<512x64xf32> -> vector<512x64xf32>
    %cst_7 = arith.constant dense<0.000000e+00> : vector<512x64xf32>
    %5 = tpu.matmul %0, %3, %cst_7 {dimension_numbers = #tpu.dot_dimension_numbers<[1], [0], [0], [1], [0, 0, 1, 1], [], []>} : vector<512x36xbf16>, vector<36x64xbf16>, vector<512x64xf32> -> vector<512x64xf32>
    %6 = arith.addf %4, %5 : vector<512x64xf32>
    %cst_8 = arith.constant dense<0.000000e+00> : vector<512x64xf32>
    %7 = tpu.matmul %1, %2, %cst_8 {dimension_numbers = #tpu.dot_dimension_numbers<[1], [0], [0], [1], [0, 0, 1, 1], [], []>} : vector<512x36xbf16>, vector<36x64xbf16>, vector<512x64xf32> -> vector<512x64xf32>
    %8 = arith.addf %6, %7 : vector<512x64xf32>
    %cst_9 = arith.constant dense<0.000000e+00> : vector<64xf32>
    %9 = vector.multi_reduction <add>, %8, %cst_9 [0] : vector<512x64xf32> to vector<64xf32>
    %10 = vector.shape_cast %9 : vector<64xf32> to vector<1x64xf32>
    %cst_10 = arith.constant 5.120000e+02 : f32
    %11 = vector.broadcast %cst_10 : f32 to vector<1x64xf32>
    %12 = arith.divf %10, %11 : vector<1x64xf32>
    %13 = vector.broadcast %12 : vector<1x64xf32> to vector<512x64xf32>
    %14 = arith.subf %8, %13 : vector<512x64xf32>
    %15 = arith.mulf %14, %14 : vector<512x64xf32>
    %cst_11 = arith.constant dense<0.000000e+00> : vector<64xf32>
    %16 = vector.multi_reduction <add>, %15, %cst_11 [0] : vector<512x64xf32> to vector<64xf32>
    %17 = vector.shape_cast %16 : vector<64xf32> to vector<1x64xf32>
    %cst_12 = arith.constant 5.120000e+02 : f32
    %18 = vector.broadcast %cst_12 : f32 to vector<1x64xf32>
    %19 = arith.divf %17, %18 : vector<1x64xf32>
    %c0_13 = arith.constant 0 : index
    %c0_14 = arith.constant 0 : index
    %20 = vector.load %arg5[%c0_13, %c0_14] : memref<1x64xf32, #tpu.memory_space<vmem>>, vector<1x64xf32>
    %cst_15 = arith.constant 9.99999974E-6 : f32
    %21 = vector.broadcast %cst_15 : f32 to vector<1x64xf32>
    %22 = arith.addf %19, %21 : vector<1x64xf32>
    %23 = math.rsqrt %22 : vector<1x64xf32>
    %24 = arith.mulf %20, %23 : vector<1x64xf32>
    %c0_16 = arith.constant 0 : index
    %c0_17 = arith.constant 0 : index
    %25 = vector.load %arg6[%c0_16, %c0_17] : memref<1x64xf32, #tpu.memory_space<vmem>>, vector<1x64xf32>
    %26 = arith.mulf %12, %24 : vector<1x64xf32>
    %27 = arith.subf %25, %26 : vector<1x64xf32>
    %28 = vector.broadcast %24 : vector<1x64xf32> to vector<512x64xf32>
    %29 = arith.mulf %8, %28 : vector<512x64xf32>
    %30 = vector.broadcast %27 : vector<1x64xf32> to vector<512x64xf32>
    %31 = arith.addf %29, %30 : vector<512x64xf32>
    %cst_18 = arith.constant 0.000000e+00 : f32
    %32 = vector.broadcast %cst_18 : f32 to vector<512x64xf32>
    %33 = arith.maximumf %31, %32 : vector<512x64xf32>
    %c0_19 = arith.constant 0 : index
    %c0_20 = arith.constant 0 : index
    %34 = vector.load %arg7[%c0_19, %c0_20] : memref<512x64xf32, #tpu.memory_space<vmem>>, vector<512x64xf32>
    tpu.vector_store %arg7[%c0_19, %c0_20], %33 {strides = array<i32>} : memref<512x64xf32, #tpu.memory_space<vmem>>, vector<512x64xf32>,
    return
  }
  func.func @transform_0(%arg0: i32) -> (i32, i32) {
    %c0_i32 = arith.constant 0 : i32
    %c0_i32_0 = arith.constant 0 : i32
    %c0_i32_1 = arith.constant 0 : i32
    return %c0_i32, %c0_i32_0 : i32, i32
  }
  func.func @transform_1(%arg0: i32) -> (i32, i32) {
    %c0_i32 = arith.constant 0 : i32
    %c0_i32_0 = arith.constant 0 : i32
    %c0_i32_1 = arith.constant 0 : i32
    return %c0_i32, %c0_i32_0 : i32, i32
  }
  func.func @transform_2(%arg0: i32) -> (i32, i32) {
    %c0_i32 = arith.constant 0 : i32
    %c0_i32_0 = arith.constant 0 : i32
    return %c0_i32, %arg0 : i32, i32
  }
  func.func @transform_3(%arg0: i32) -> (i32, i32) {
    %c0_i32 = arith.constant 0 : i32
    %c0_i32_0 = arith.constant 0 : i32
    return %c0_i32, %arg0 : i32, i32
  }
  func.func @transform_4(%arg0: i32) -> (i32, i32) {
    %c0_i32 = arith.constant 0 : i32
    %c0_i32_0 = arith.constant 0 : i32
    return %c0_i32, %arg0 : i32, i32
  }
  func.func @transform_5(%arg0: i32) -> (i32, i32) {
    %c0_i32 = arith.constant 0 : i32
    %c0_i32_0 = arith.constant 0 : i32
    return %c0_i32, %arg0 : i32, i32
  }
  func.func @transform_6(%arg0: i32) -> (i32, i32) {
    %c0_i32 = arith.constant 0 : i32
    %c0_i32_0 = arith.constant 0 : i32
    return %c0_i32, %arg0 : i32, i32
  }
}

</mosaic_0001>

<llo_original>
// kernel: tpu_custom_call.1
$region0: #{tpu_custom_call.1}
  #allocation0 [shape = 'u32[]', space=smem, size = 0x4, offset = 0x4, fixed_abs, tag = 'smem constant byte address 0x4 - core index']
  #allocation1 [shape = 'u32[144,128]{1,0:T(1,128)}', space=vmem, size = 0x12000, scoped, tag = 'internal scratch']
  %s0 = inlined_call_operand.vmem [shape: bf16[512,36], index: 0, kind: input, shape index: {}]
  %s1 = inlined_call_operand.vmem [shape: bf16[512,36], index: 1, kind: input, shape index: {}]
  %s2 = inlined_call_operand.vmem [shape: bf16[36,64], index: 2, kind: input, shape index: {}]
  %s3 = inlined_call_operand.vmem [shape: bf16[36,64], index: 3, kind: input, shape index: {}]
  %s4 = inlined_call_operand.vmem [shape: f32[1,64], index: 4, kind: input, shape index: {}]
  %s5 = inlined_call_operand.vmem [shape: f32[1,64], index: 5, kind: input, shape index: {}]
  %s6 = inlined_call_operand.vmem [shape: f32[512,64], index: 6, kind: output, shape index: {}]
  %s7 = sld [smem:[#allocation0]]
  $region34: #{tpu_custom_call.1} parent=0
    _
  %s9 = ssub.s32 1, %s7
  %s10 = scalar_select 0, %s9, %s7
  // Predicated region
  $region2: #{tpu_custom_call.1} parent=0 // pred_check
    _
  $region3: #{tpu_custom_call.1} parent=0 // pred_check_branch
    %12 = sbr.rel (0) target = $region5
  $region4: #{tpu_custom_call.1} parent=0 // pred_region
    _
  $region5: #{tpu_custom_call.1} parent=0 // pred_fallthru
    _
  // Predicated region
  $region6: #{tpu_custom_call.1} parent=0 // pred_check
    _
  $region7: #{tpu_custom_call.1} parent=0 // pred_check_branch
    %14 = sbr.rel (0) target = $region9
  $region8: #{tpu_custom_call.1} parent=0 // pred_region
    _
  $region9: #{tpu_custom_call.1} parent=0 // pred_fallthru
    _
  // Predicated region
  $region10: #{tpu_custom_call.1} parent=0 // pred_check
    _
  $region11: #{tpu_custom_call.1} parent=0 // pred_check_branch
    %16 = sbr.rel (0) target = $region13
  $region12: #{tpu_custom_call.1} parent=0 // pred_region
    _
  $region13: #{tpu_custom_call.1} parent=0 // pred_fallthru
    _
  // Predicated region
  $region14: #{tpu_custom_call.1} parent=0 // pred_check
    _
  $region15: #{tpu_custom_call.1} parent=0 // pred_check_branch
    %18 = sbr.rel (0) target = $region17
  $region16: #{tpu_custom_call.1} parent=0 // pred_region
    _
  $region17: #{tpu_custom_call.1} parent=0 // pred_fallthru
    _
  // Predicated region
  $region18: #{tpu_custom_call.1} parent=0 // pred_check
    _
  $region19: #{tpu_custom_call.1} parent=0 // pred_check_branch
    %20 = sbr.rel (0) target = $region21
  $region20: #{tpu_custom_call.1} parent=0 // pred_region
    _
  $region21: #{tpu_custom_call.1} parent=0 // pred_fallthru
    _
  // Predicated region
  $region22: #{tpu_custom_call.1} parent=0 // pred_check
    _
  $region23: #{tpu_custom_call.1} parent=0 // pred_check_branch
    %22 = sbr.rel (0) target = $region25
  $region24: #{tpu_custom_call.1} parent=0 // pred_region
    _
  $region25: #{tpu_custom_call.1} parent=0 // pred_fallthru
    _
  %v24 = vld [vmem:[%s0] sm:$0xf]
  %v25 = vld [vmem:[%s0 + $0x4] sm:$0xf]
  %v26 = vld [vmem:[%s0 + $0x8] sm:$0xf]
  %v27 = vld [vmem:[%s0 + $0xc] sm:$0xf]
  %v28 = vld [vmem:[%s0 + $0x10] sm:$0xf]
  %v29 = vld [vmem:[%s0 + $0x14] sm:$0xf]
  %v30 = vld [vmem:[%s0 + $0x18] sm:$0xf]
  %v31 = vld [vmem:[%s0 + $0x1c] sm:$0xf]
  %v32 = vld [vmem:[%s0 + $0x20] sm:$0xf]
  %v33 = vld [vmem:[%s0 + $0x24] sm:$0xf]
  %v34 = vld [vmem:[%s0 + $0x28] sm:$0xf]
  %v35 = vld [vmem:[%s0 + $0x2c] sm:$0xf]
  %v36 = vld [vmem:[%s0 + $0x30] sm:$0xf]
  %v37 = vld [vmem:[%s0 + $0x34] sm:$0xf]
  %v38 = vld [vmem:[%s0 + $0x38] sm:$0xf]
  %v39 = vld [vmem:[%s0 + $0x3c] sm:$0xf]
  %v40 = vld [vmem:[%s0 + $0x40] sm:$0xf]
  %v41 = vld [vmem:[%s0 + $0x44] sm:$0xf]
  %v42 = vld [vmem:[%s0 + $0x48] sm:$0xf]
  %v43 = vld [vmem:[%s0 + $0x4c] sm:$0xf]
  %v44 = vld [vmem:[%s0 + $0x50] sm:$0xf]
  %v45 = vld [vmem:[%s0 + $0x54] sm:$0xf]
  %v46 = vld [vmem:[%s0 + $0x58] sm:$0xf]
  %v47 = vld [vmem:[%s0 + $0x5c] sm:$0xf]
  %v48 = vld [vmem:[%s0 + $0x60] sm:$0xf]
  %v49 = vld [vmem:[%s0 + $0x64] sm:$0xf]
  %v50 = vld [vmem:[%s0 + $0x68] sm:$0xf]
  %v51 = vld [vmem:[%s0 + $0x6c] sm:$0xf]
  %v52 = vld [vmem:[%s0 + $0x70] sm:$0xf]
  %v53 = vld [vmem:[%s0 + $0x74] sm:$0xf]
  %v54 = vld [vmem:[%s0 + $0x78] sm:$0xf]
  %v55 = vld [vmem:[%s0 + $0x7c] sm:$0xf]
  %v56 = vld [vmem:[%s0 + $0x80] sm:$0xf]
  %v57 = vld [vmem:[%s0 + $0x84] sm:$0xf]
  %v58 = vld [vmem:[%s0 + $0x88] sm:$0xf]
  %v59 = vld [vmem:[%s0 + $0x8c] sm:$0xf]
  %v60 = vld [vmem:[%s0 + $0x90] sm:$0xf]
  %v61 = vld [vmem:[%s0 + $0x94] sm:$0xf]
  %v62 = vld [vmem:[%s0 + $0x98] sm:$0xf]
  %v63 = vld [vmem:[%s0 + $0x9c] sm:$0xf]
  %v64 = vld [vmem:[%s0 + $0xa0] sm:$0xf]
  %v65 = vld [vmem:[%s0 + $0xa4] sm:$0xf]
  %v66 = vld [vmem:[%s0 + $0xa8] sm:$0xf]
  %v67 = vld [vmem:[%s0 + $0xac] sm:$0xf]
  %v68 = vld [vmem:[%s0 + $0xb0] sm:$0xf]
  %v69 = vld [vmem:[%s0 + $0xb4] sm:$0xf]
  %v70 = vld [vmem:[%s0 + $0xb8] sm:$0xf]
  %v71 = vld [vmem:[%s0 + $0xbc] sm:$0xf]
  %v72 = vld [vmem:[%s0 + $0xc0] sm:$0xf]
  %v73 = vld [vmem:[%s0 + $0xc4] sm:$0xf]
  %v74 = vld [vmem:[%s0 + $0xc8] sm:$0xf]
  %v75 = vld [vmem:[%s0 + $0xcc] sm:$0xf]
  %v76 = vld [vmem:[%s0 + $0xd0] sm:$0xf]
  %v77 = vld [vmem:[%s0 + $0xd4] sm:$0xf]
  %v78 = vld [vmem:[%s0 + $0xd8] sm:$0xf]
  %v79 = vld [vmem:[%s0 + $0xdc] sm:$0xf]
  %v80 = vld [vmem:[%s0 + $0xe0] sm:$0xf]
  %v81 = vld [vmem:[%s0 + $0xe4] sm:$0xf]
  %v82 = vld [vmem:[%s0 + $0xe8] sm:$0xf]
  %v83 = vld [vmem:[%s0 + $0xec] sm:$0xf]
  %v84 = vld [vmem:[%s0 + $0xf0] sm:$0xf]
  %v85 = vld [vmem:[%s0 + $0xf4] sm:$0xf]
  %v86 = vld [vmem:[%s0 + $0xf8] sm:$0xf]
  %v87 = vld [vmem:[%s0 + $0xfc] sm:$0xf]
  %v88 = vld [vmem:[%s1] sm:$0xf]
  %v89 = vld [vmem:[%s1 + $0x4] sm:$0xf]
  %v90 = vld [vmem:[%s1 + $0x8] sm:$0xf]
  %v91 = vld [vmem:[%s1 + $0xc] sm:$0xf]
  %v92 = vld [vmem:[%s1 + $0x10] sm:$0xf]
  %v93 = vld [vmem:[%s1 + $0x14] sm:$0xf]
  %v94 = vld [vmem:[%s1 + $0x18] sm:$0xf]
  %v95 = vld [vmem:[%s1 + $0x1c] sm:$0xf]
  %v96 = vld [vmem:[%s1 + $0x20] sm:$0xf]
  %v97 = vld [vmem:[%s1 + $0x24] sm:$0xf]
  %v98 = vld [vmem:[%s1 + $0x28] sm:$0xf]
  %v99 = vld [vmem:[%s1 + $0x2c] sm:$0xf]
  %v100 = vld [vmem:[%s1 + $0x30] sm:$0xf]
  %v101 = vld [vmem:[%s1 + $0x34] sm:$0xf]
  %v102 = vld [vmem:[%s1 + $0x38] sm:$0xf]
  %v103 = vld [vmem:[%s1 + $0x3c] sm:$0xf]
  %v104 = vld [vmem:[%s1 + $0x40] sm:$0xf]
  %v105 = vld [vmem:[%s1 + $0x44] sm:$0xf]
  %v106 = vld [vmem:[%s1 + $0x48] sm:$0xf]
  %v107 = vld [vmem:[%s1 + $0x4c] sm:$0xf]
  %v108 = vld [vmem:[%s1 + $0x50] sm:$0xf]
  %v109 = vld [vmem:[%s1 + $0x54] sm:$0xf]
  %v110 = vld [vmem:[%s1 + $0x58] sm:$0xf]
  %v111 = vld [vmem:[%s1 + $0x5c] sm:$0xf]
  %v112 = vld [vmem:[%s1 + $0x60] sm:$0xf]
  %v113 = vld [vmem:[%s1 + $0x64] sm:$0xf]
  %v114 = vld [vmem:[%s1 + $0x68] sm:$0xf]
  %v115 = vld [vmem:[%s1 + $0x6c] sm:$0xf]
  %v116 = vld [vmem:[%s1 + $0x70] sm:$0xf]
  %v117 = vld [vmem:[%s1 + $0x74] sm:$0xf]
  %v118 = vld [vmem:[%s1 + $0x78] sm:$0xf]
  %v119 = vld [vmem:[%s1 + $0x7c] sm:$0xf]
  %v120 = vld [vmem:[%s1 + $0x80] sm:$0xf]
  %v121 = vld [vmem:[%s1 + $0x84] sm:$0xf]
  %v122 = vld [vmem:[%s1 + $0x88] sm:$0xf]
  %v123 = vld [vmem:[%s1 + $0x8c] sm:$0xf]
  %v124 = vld [vmem:[%s1 + $0x90] sm:$0xf]
  %v125 = vld [vmem:[%s1 + $0x94] sm:$0xf]
  %v126 = vld [vmem:[%s1 + $0x98] sm:$0xf]
  %v127 = vld [vmem:[%s1 + $0x9c] sm:$0xf]
  %v128 = vld [vmem:[%s1 + $0xa0] sm:$0xf]
  %v129 = vld [vmem:[%s1 + $0xa4] sm:$0xf]
  %v130 = vld [vmem:[%s1 + $0xa8] sm:$0xf]
  %v131 = vld [vmem:[%s1 + $0xac] sm:$0xf]
  %v132 = vld [vmem:[%s1 + $0xb0] sm:$0xf]
  %v133 = vld [vmem:[%s1 + $0xb4] sm:$0xf]
  %v134 = vld [vmem:[%s1 + $0xb8] sm:$0xf]
  %v135 = vld [vmem:[%s1 + $0xbc] sm:$0xf]
  %v136 = vld [vmem:[%s1 + $0xc0] sm:$0xf]
  %v137 = vld [vmem:[%s1 + $0xc4] sm:$0xf]
  %v138 = vld [vmem:[%s1 + $0xc8] sm:$0xf]
  %v139 = vld [vmem:[%s1 + $0xcc] sm:$0xf]
  %v140 = vld [vmem:[%s1 + $0xd0] sm:$0xf]
  %v141 = vld [vmem:[%s1 + $0xd4] sm:$0xf]
  %v142 = vld [vmem:[%s1 + $0xd8] sm:$0xf]
  %v143 = vld [vmem:[%s1 + $0xdc] sm:$0xf]
  %v144 = vld [vmem:[%s1 + $0xe0] sm:$0xf]
  %v145 = vld [vmem:[%s1 + $0xe4] sm:$0xf]
  %v146 = vld [vmem:[%s1 + $0xe8] sm:$0xf]
  %v147 = vld [vmem:[%s1 + $0xec] sm:$0xf]
  %v148 = vld [vmem:[%s1 + $0xf0] sm:$0xf]
  %v149 = vld [vmem:[%s1 + $0xf4] sm:$0xf]
  %v150 = vld [vmem:[%s1 + $0xf8] sm:$0xf]
  %v151 = vld [vmem:[%s1 + $0xfc] sm:$0xf]
  %v152 = vld [vmem:[%s2] sm:$0xf]
  %v153 = vld [vmem:[%s2 + $0x4] sm:$0xf]
  %v154 = vld [vmem:[%s2 + $0x8] sm:$0xf]
  %v155 = vld [vmem:[%s2 + $0xc] sm:$0xf]
  %v156 = vld [vmem:[%s2 + $0x10] sm:$0x3]
  %v157 = vld [vmem:[%s3] sm:$0xf]
  %v158 = vld [vmem:[%s3 + $0x4] sm:$0xf]
  %v159 = vld [vmem:[%s3 + $0x8] sm:$0xf]
  %v160 = vld [vmem:[%s3 + $0xc] sm:$0xf]
  %v161 = vld [vmem:[%s3 + $0x10] sm:$0x3]
  %v226 = vunpack.c.l.b16 %v24
  %v227 = vunpack.c.l.b16 %v25
  %v228 = vunpack.c.l.b16 %v26
  %v229 = vunpack.c.l.b16 %v27
  %v230 = vunpack.c.l.b16 %v28
  %v231 = vunpack.c.l.b16 %v29
  %v232 = vunpack.c.l.b16 %v30
  %v233 = vunpack.c.l.b16 %v31
  %v234 = vunpack.c.l.b16 %v32
  %v235 = vunpack.c.l.b16 %v33
  %v236 = vunpack.c.l.b16 %v34
  %v237 = vunpack.c.l.b16 %v35
  %v238 = vunpack.c.l.b16 %v36
  %v239 = vunpack.c.l.b16 %v37
  %v240 = vunpack.c.l.b16 %v38
  %v241 = vunpack.c.l.b16 %v39
  %v242 = vunpack.c.l.b16 %v40
  %v243 = vunpack.c.l.b16 %v41
  %v244 = vunpack.c.l.b16 %v42
  %v245 = vunpack.c.l.b16 %v43
  %v246 = vunpack.c.l.b16 %v44
  %v247 = vunpack.c.l.b16 %v45
  %v248 = vunpack.c.l.b16 %v46
  %v249 = vunpack.c.l.b16 %v47
  %v250 = vunpack.c.l.b16 %v48
  %v251 = vunpack.c.l.b16 %v49
  %v252 = vunpack.c.l.b16 %v50
  %v253 = vunpack.c.l.b16 %v51
  %v254 = vunpack.c.l.b16 %v52
  %v255 = vunpack.c.l.b16 %v53
  %v256 = vunpack.c.l.b16 %v54
  %v257 = vunpack.c.l.b16 %v55
  %v258 = vunpack.c.l.b16 %v56
  %v259 = vunpack.c.l.b16 %v57
  %v260 = vunpack.c.l.b16 %v58
  %v261 = vunpack.c.l.b16 %v59
  %v262 = vunpack.c.l.b16 %v60
  %v263 = vunpack.c.l.b16 %v61
  %v264 = vunpack.c.l.b16 %v62
  %v265 = vunpack.c.l.b16 %v63
  %v266 = vunpack.c.l.b16 %v64
  %v267 = vunpack.c.l.b16 %v65
  %v268 = vunpack.c.l.b16 %v66
  %v269 = vunpack.c.l.b16 %v67
  %v270 = vunpack.c.l.b16 %v68
  %v271 = vunpack.c.l.b16 %v69
  %v272 = vunpack.c.l.b16 %v70
  %v273 = vunpack.c.l.b16 %v71
  %v274 = vunpack.c.l.b16 %v72
  %v275 = vunpack.c.l.b16 %v73
  %v276 = vunpack.c.l.b16 %v74
  %v277 = vunpack.c.l.b16 %v75
  %v278 = vunpack.c.l.b16 %v76
  %v279 = vunpack.c.l.b16 %v77
  %v280 = vunpack.c.l.b16 %v78
  %v281 = vunpack.c.l.b16 %v79
  %v282 = vunpack.c.l.b16 %v80
  %v283 = vunpack.c.l.b16 %v81
  %v284 = vunpack.c.l.b16 %v82
  %v285 = vunpack.c.l.b16 %v83
  %v286 = vunpack.c.l.b16 %v84
  %v287 = vunpack.c.l.b16 %v85
  %v288 = vunpack.c.l.b16 %v86
  %v289 = vunpack.c.l.b16 %v87
  %v290 = vpack.c.b16 %v227, %v226
  %v291 = vpack.c.b16 %v229, %v228
  %v292 = vpack.c.b16 %v231, %v230
  %v293 = vpack.c.b16 %v233, %v232
  %v294 = vpack.c.b16 %v235, %v234
  %v295 = vpack.c.b16 %v237, %v236
  %v296 = vpack.c.b16 %v239, %v238
  %v297 = vpack.c.b16 %v241, %v240
  %v298 = vpack.c.b16 %v243, %v242
  %v299 = vpack.c.b16 %v245, %v244
  %v300 = vpack.c.b16 %v247, %v246
  %v301 = vpack.c.b16 %v249, %v248
  %v302 = vpack.c.b16 %v251, %v250
  %v303 = vpack.c.b16 %v253, %v252
  %v304 = vpack.c.b16 %v255, %v254
  %v305 = vpack.c.b16 %v257, %v256
  %v306 = vpack.c.b16 %v259, %v258
  %v307 = vpack.c.b16 %v261, %v260
  %v308 = vpack.c.b16 %v263, %v262
  %v309 = vpack.c.b16 %v265, %v264
  %v310 = vpack.c.b16 %v267, %v266
  %v311 = vpack.c.b16 %v269, %v268
  %v312 = vpack.c.b16 %v271, %v270
  %v313 = vpack.c.b16 %v273, %v272
  %v314 = vpack.c.b16 %v275, %v274
  %v315 = vpack.c.b16 %v277, %v276
  %v316 = vpack.c.b16 %v279, %v278
  %v317 = vpack.c.b16 %v281, %v280
  %v318 = vpack.c.b16 %v283, %v282
  %v319 = vpack.c.b16 %v285, %v284
  %v320 = vpack.c.b16 %v287, %v286
  %v321 = vpack.c.b16 %v289, %v288
  %v327 = vunpack.c.l.b16 %v157
  %v328 = vunpack.c.l.b16 %v158
  %v329 = vunpack.c.l.b16 %v159
  %v330 = vunpack.c.l.b16 %v160
  %v331 = vunpack.c.l.b16 %v161
  %v332 = vpack.c.b16 %v328, %v327
  %v333 = vpack.c.b16 %v330, %v329
  %v334 = vpack.c.b16 %v331, %v331
  %vm337 = vcmask 293888
  %v339 = vsel %vm337, %v290, 0
  %v342 = vsel %vm337, %v291, 0
  %v345 = vsel %vm337, %v292, 0
  %v348 = vsel %vm337, %v293, 0
  %v351 = vsel %vm337, %v294, 0
  %v354 = vsel %vm337, %v295, 0
  %v357 = vsel %vm337, %v296, 0
  %v360 = vsel %vm337, %v297, 0
  %v363 = vsel %vm337, %v298, 0
  %v366 = vsel %vm337, %v299, 0
  %v369 = vsel %vm337, %v300, 0
  %v372 = vsel %vm337, %v301, 0
  %v375 = vsel %vm337, %v302, 0
  %v378 = vsel %vm337, %v303, 0
  %v381 = vsel %vm337, %v304, 0
  %v384 = vsel %vm337, %v305, 0
  %v387 = vsel %vm337, %v306, 0
  %v390 = vsel %vm337, %v307, 0
  %v393 = vsel %vm337, %v308, 0
  %v396 = vsel %vm337, %v309, 0
  %v399 = vsel %vm337, %v310, 0
  %v402 = vsel %vm337, %v311, 0
  %v405 = vsel %vm337, %v312, 0
  %v408 = vsel %vm337, %v313, 0
  %v411 = vsel %vm337, %v314, 0
  %v414 = vsel %vm337, %v315, 0
  %v417 = vsel %vm337, %v316, 0
  %v420 = vsel %vm337, %v317, 0
  %v423 = vsel %vm337, %v318, 0
  %v426 = vsel %vm337, %v319, 0
  %v429 = vsel %vm337, %v320, 0
  %v432 = vsel %vm337, %v321, 0
  %vm434 = vcmask 1041408
  %v436 = vsel %vm434, %v334, 0
  %438 = vmatprep.subr.bf16.mxu0 0
  %439 = vmatpush1.bf16.msra.mxu0 %v332
  %440 = vmatprep.subr.bf16.mxu0 0
  %441 = vmatpush1.bf16.msra.mxu0 %v333
  %442 = vmatprep.subr.bf16.mxu0 0
  %443 = vmatpush1.bf16.msra.mxu0 %v436
  %444 = vmatprep.subr.bf16.mxu0 0
  %445 = vmatpush1.bf16.msra.mxu0 0
  %446 = vmatprep.subr.bf16.mxu0 0
  %447 = vmatpush1.bf16.msra.mxu0 0
  %448 = vmatprep.subr.bf16.mxu0 0
  %449 = vmatpush1.bf16.msra.mxu0 0
  %450 = vmatprep.subr.bf16.mxu0 0
  %451 = vmatpush1.bf16.msra.mxu0 0
  %452 = vmatprep.subr.bf16.mxu0 0
  %453 = vmatpush1.bf16.msra.mxu0 0
  %454 = vmatprep.subr.bf16.mxu0 0
  %455 = vmatpush1.bf16.msra.mxu0 0
  %456 = vmatprep.subr.bf16.mxu0 0
  %457 = vmatpush1.bf16.msra.mxu0 0
  %458 = vmatprep.subr.bf16.mxu0 0
  %459 = vmatpush1.bf16.msra.mxu0 0
  %460 = vmatprep.subr.bf16.mxu0 0
  %461 = vmatpush1.bf16.msra.mxu0 0
  %462 = vmatprep.subr.bf16.mxu0 0
  %463 = vmatpush1.bf16.msra.mxu0 0
  %464 = vmatprep.subr.bf16.mxu0 0
  %465 = vmatpush1.bf16.msra.mxu0 0
  %466 = vmatprep.subr.bf16.mxu0 0
  %467 = vmatpush1.bf16.msra.mxu0 0
  %468 = vmatprep.subr.bf16.mxu0 0
  %469 = vmatpush1.bf16.msra.mxu0 0
  %470 = vmatprep.mubr.bf16.mxu0 0
  %471 = vmatmul.mubr.bf16.gmra.mrb[0].mxu0 %v339
  %v472 = vpop.f32.mrb[0].mxu0
  %v473 = vadd.f32 0.0, %v472
  %v474 = vpop.f32.mrb[0].mxu0
  %v475 = vpop.f32.mrb[0].mxu0
  %v476 = vadd.f32 0.0, %v475
  %v477 = vpop.f32.mrb[0].mxu0
  %478 = vmatprep.mubr.bf16.mxu0 0
  %479 = vmatmul.mubr.bf16.gmra.mrb[0].mxu0 %v342
  %v480 = vpop.f32.mrb[0].mxu0
  %v481 = vadd.f32 0.0, %v480
  %v482 = vpop.f32.mrb[0].mxu0
  %v483 = vpop.f32.mrb[0].mxu0
  %v484 = vadd.f32 0.0, %v483
  %v485 = vpop.f32.mrb[0].mxu0
  %486 = vmatprep.mubr.bf16.mxu0 0
  %487 = vmatmul.mubr.bf16.gmra.mrb[0].mxu0 %v345
  %v488 = vpop.f32.mrb[0].mxu0
  %v489 = vadd.f32 0.0, %v488
  %v490 = vpop.f32.mrb[0].mxu0
  %v491 = vpop.f32.mrb[0].mxu0
  %v492 = vadd.f32 0.0, %v491
  %v493 = vpop.f32.mrb[0].mxu0
  %494 = vmatprep.mubr.bf16.mxu0 0
  %495 = vmatmul.mubr.bf16.gmra.mrb[0].mxu0 %v348
  %v496 = vpop.f32.mrb[0].mxu0
  %v497 = vadd.f32 0.0, %v496
  %v498 = vpop.f32.mrb[0].mxu0
  %v499 = vpop.f32.mrb[0].mxu0
  %v500 = vadd.f32 0.0, %v499
  %v501 = vpop.f32.mrb[0].mxu0
  %502 = vmatprep.mubr.bf16.mxu0 0
  %503 = vmatmul.mubr.bf16.gmra.mrb[0].mxu0 %v351
  %v504 = vpop.f32.mrb[0].mxu0
  %v505 = vadd.f32 0.0, %v504
  %v506 = vpop.f32.mrb[0].mxu0
  %v507 = vpop.f32.mrb[0].mxu0
  %v508 = vadd.f32 0.0, %v507
  %v509 = vpop.f32.mrb[0].mxu0
  %510 = vmatprep.mubr.bf16.mxu0 0
  %511 = vmatmul.mubr.bf16.gmra.mrb[0].mxu0 %v354
  %v512 = vpop.f32.mrb[0].mxu0
  %v513 = vadd.f32 0.0, %v512
  %v514 = vpop.f32.mrb[0].mxu0
  %v515 = vpop.f32.mrb[0].mxu0
  %v516 = vadd.f32 0.0, %v515
  %v517 = vpop.f32.mrb[0].mxu0
  %518 = vmatprep.mubr.bf16.mxu0 0
  %519 = vmatmul.mubr.bf16.gmra.mrb[0].mxu0 %v357
  %v520 = vpop.f32.mrb[0].mxu0
  %v521 = vadd.f32 0.0, %v520
  %v522 = vpop.f32.mrb[0].mxu0
  %v523 = vpop.f32.mrb[0].mxu0
  %v524 = vadd.f32 0.0, %v523
  %v525 = vpop.f32.mrb[0].mxu0
  %526 = vmatprep.mubr.bf16.mxu0 0
  %527 = vmatmul.mubr.bf16.gmra.mrb[0].mxu0 %v360
  %v528 = vpop.f32.mrb[0].mxu0
  %v529 = vadd.f32 0.0, %v528
  %v530 = vpop.f32.mrb[0].mxu0
  %v531 = vpop.f32.mrb[0].mxu0
  %v532 = vadd.f32 0.0, %v531
  %v533 = vpop.f32.mrb[0].mxu0
  %534 = vmatprep.mubr.bf16.mxu0 0
  %535 = vmatmul.mubr.bf16.gmra.mrb[0].mxu0 %v363
  %v536 = vpop.f32.mrb[0].mxu0
  %v537 = vadd.f32 0.0, %v536
  %v538 = vpop.f32.mrb[0].mxu0
  %v539 = vpop.f32.mrb[0].mxu0
  %v540 = vadd.f32 0.0, %v539
  %v541 = vpop.f32.mrb[0].mxu0
  %542 = vmatprep.mubr.bf16.mxu0 0
  %543 = vmatmul.mubr.bf16.gmra.mrb[0].mxu0 %v366
  %v544 = vpop.f32.mrb[0].mxu0
  %v545 = vadd.f32 0.0, %v544
  %v546 = vpop.f32.mrb[0].mxu0
  %v547 = vpop.f32.mrb[0].mxu0
  %v548 = vadd.f32 0.0, %v547
  %v549 = vpop.f32.mrb[0].mxu0
  %550 = vmatprep.mubr.bf16.mxu0 0
  %551 = vmatmul.mubr.bf16.gmra.mrb[0].mxu0 %v369
  %v552 = vpop.f32.mrb[0].mxu0
  %v553 = vadd.f32 0.0, %v552
  %v554 = vpop.f32.mrb[0].mxu0
  %v555 = vpop.f32.mrb[0].mxu0
  %v556 = vadd.f32 0.0, %v555
  %v557 = vpop.f32.mrb[0].mxu0
  %558 = vmatprep.mubr.bf16.mxu0 0
  %559 = vmatmul.mubr.bf16.gmra.mrb[0].mxu0 %v372
  %v560 = vpop.f32.mrb[0].mxu0
  %v561 = vadd.f32 0.0, %v560
  %v562 = vpop.f32.mrb[0].mxu0
  %v563 = vpop.f32.mrb[0].mxu0
  %v564 = vadd.f32 0.0, %v563
  %v565 = vpop.f32.mrb[0].mxu0
  %566 = vmatprep.mubr.bf16.mxu0 0
  %567 = vmatmul.mubr.bf16.gmra.mrb[0].mxu0 %v375
  %v568 = vpop.f32.mrb[0].mxu0
  %v569 = vadd.f32 0.0, %v568
  %v570 = vpop.f32.mrb[0].mxu0
  %v571 = vpop.f32.mrb[0].mxu0
  %v572 = vadd.f32 0.0, %v571
  %v573 = vpop.f32.mrb[0].mxu0
  %574 = vmatprep.mubr.bf16.mxu0 0
  %575 = vmatmul.mubr.bf16.gmra.mrb[0].mxu0 %v378
  %v576 = vpop.f32.mrb[0].mxu0
  %v577 = vadd.f32 0.0, %v576
  %v578 = vpop.f32.mrb[0].mxu0
  %v579 = vpop.f32.mrb[0].mxu0
  %v580 = vadd.f32 0.0, %v579
  %v581 = vpop.f32.mrb[0].mxu0
  %582 = vmatprep.mubr.bf16.mxu0 0
  %583 = vmatmul.mubr.bf16.gmra.mrb[0].mxu0 %v381
  %v584 = vpop.f32.mrb[0].mxu0
  %v585 = vadd.f32 0.0, %v584
  %v586 = vpop.f32.mrb[0].mxu0
  %v587 = vpop.f32.mrb[0].mxu0
  %v588 = vadd.f32 0.0, %v587
  %v589 = vpop.f32.mrb[0].mxu0
  %590 = vmatprep.mubr.bf16.mxu0 0
  %591 = vmatmul.mubr.bf16.gmra.mrb[0].mxu0 %v384
  %v592 = vpop.f32.mrb[0].mxu0
  %v593 = vadd.f32 0.0, %v592
  %v594 = vpop.f32.mrb[0].mxu0
  %v595 = vpop.f32.mrb[0].mxu0
  %v596 = vadd.f32 0.0, %v595
  %v597 = vpop.f32.mrb[0].mxu0
  %598 = vmatprep.mubr.bf16.mxu0 0
  %599 = vmatmul.mubr.bf16.gmra.mrb[0].mxu0 %v387
  %v600 = vpop.f32.mrb[0].mxu0
  %v601 = vadd.f32 0.0, %v600
  %v602 = vpop.f32.mrb[0].mxu0
  %v603 = vpop.f32.mrb[0].mxu0
  %v604 = vadd.f32 0.0, %v603
  %v605 = vpop.f32.mrb[0].mxu0
  %606 = vmatprep.mubr.bf16.mxu0 0
  %607 = vmatmul.mubr.bf16.gmra.mrb[0].mxu0 %v390
  %v608 = vpop.f32.mrb[0].mxu0
  %v609 = vadd.f32 0.0, %v608
  %v610 = vpop.f32.mrb[0].mxu0
  %v611 = vpop.f32.mrb[0].mxu0
  %v612 = vadd.f32 0.0, %v611
  %v613 = vpop.f32.mrb[0].mxu0
  %614 = vmatprep.mubr.bf16.mxu0 0
  %615 = vmatmul.mubr.bf16.gmra.mrb[0].mxu0 %v393
  %v616 = vpop.f32.mrb[0].mxu0
  %v617 = vadd.f32 0.0, %v616
  %v618 = vpop.f32.mrb[0].mxu0
  %v619 = vpop.f32.mrb[0].mxu0
  %v620 = vadd.f32 0.0, %v619
  %v621 = vpop.f32.mrb[0].mxu0
  %622 = vmatprep.mubr.bf16.mxu0 0
  %623 = vmatmul.mubr.bf16.gmra.mrb[0].mxu0 %v396
  %v624 = vpop.f32.mrb[0].mxu0
  %v625 = vadd.f32 0.0, %v624
  %v626 = vpop.f32.mrb[0].mxu0
  %v627 = vpop.f32.mrb[0].mxu0
  %v628 = vadd.f32 0.0, %v627
  %v629 = vpop.f32.mrb[0].mxu0
  %630 = vmatprep.mubr.bf16.mxu0 0
  %631 = vmatmul.mubr.bf16.gmra.mrb[0].mxu0 %v399
  %v632 = vpop.f32.mrb[0].mxu0
  %v633 = vadd.f32 0.0, %v632
  %v634 = vpop.f32.mrb[0].mxu0
  %v635 = vpop.f32.mrb[0].mxu0
  %v636 = vadd.f32 0.0, %v635
  %v637 = vpop.f32.mrb[0].mxu0
  %638 = vmatprep.mubr.bf16.mxu0 0
  %639 = vmatmul.mubr.bf16.gmra.mrb[0].mxu0 %v402
  %v640 = vpop.f32.mrb[0].mxu0
  %v641 = vadd.f32 0.0, %v640
  %v642 = vpop.f32.mrb[0].mxu0
  %v643 = vpop.f32.mrb[0].mxu0
  %v644 = vadd.f32 0.0, %v643
  %v645 = vpop.f32.mrb[0].mxu0
  %646 = vmatprep.mubr.bf16.mxu0 0
  %647 = vmatmul.mubr.bf16.gmra.mrb[0].mxu0 %v405
  %v648 = vpop.f32.mrb[0].mxu0
  %v649 = vadd.f32 0.0, %v648
  %v650 = vpop.f32.mrb[0].mxu0
  %v651 = vpop.f32.mrb[0].mxu0
  %v652 = vadd.f32 0.0, %v651
  %v653 = vpop.f32.mrb[0].mxu0
  %654 = vmatprep.mubr.bf16.mxu0 0
  %655 = vmatmul.mubr.bf16.gmra.mrb[0].mxu0 %v408
  %v656 = vpop.f32.mrb[0].mxu0
  %v657 = vadd.f32 0.0, %v656
  %v658 = vpop.f32.mrb[0].mxu0
  %v659 = vpop.f32.mrb[0].mxu0
  %v660 = vadd.f32 0.0, %v659
  %v661 = vpop.f32.mrb[0].mxu0
  %662 = vmatprep.mubr.bf16.mxu0 0
  %663 = vmatmul.mubr.bf16.gmra.mrb[0].mxu0 %v411
  %v664 = vpop.f32.mrb[0].mxu0
  %v665 = vadd.f32 0.0, %v664
  %v666 = vpop.f32.mrb[0].mxu0
  %v667 = vpop.f32.mrb[0].mxu0
  %v668 = vadd.f32 0.0, %v667
  %v669 = vpop.f32.mrb[0].mxu0
  %670 = vmatprep.mubr.bf16.mxu0 0
  %671 = vmatmul.mubr.bf16.gmra.mrb[0].mxu0 %v414
  %v672 = vpop.f32.mrb[0].mxu0
  %v673 = vadd.f32 0.0, %v672
  %v674 = vpop.f32.mrb[0].mxu0
  %v675 = vpop.f32.mrb[0].mxu0
  %v676 = vadd.f32 0.0, %v675
  %v677 = vpop.f32.mrb[0].mxu0
  %678 = vmatprep.mubr.bf16.mxu0 0
  %679 = vmatmul.mubr.bf16.gmra.mrb[0].mxu0 %v417
  %v680 = vpop.f32.mrb[0].mxu0
  %v681 = vadd.f32 0.0, %v680
  %v682 = vpop.f32.mrb[0].mxu0
  %v683 = vpop.f32.mrb[0].mxu0
  %v684 = vadd.f32 0.0, %v683
  %v685 = vpop.f32.mrb[0].mxu0
  %686 = vmatprep.mubr.bf16.mxu0 0
  %687 = vmatmul.mubr.bf16.gmra.mrb[0].mxu0 %v420
  %v688 = vpop.f32.mrb[0].mxu0
  %v689 = vadd.f32 0.0, %v688
  %v690 = vpop.f32.mrb[0].mxu0
  %v691 = vpop.f32.mrb[0].mxu0
  %v692 = vadd.f32 0.0, %v691
  %v693 = vpop.f32.mrb[0].mxu0
  %694 = vmatprep.mubr.bf16.mxu0 0
  %695 = vmatmul.mubr.bf16.gmra.mrb[0].mxu0 %v423
  %v696 = vpop.f32.mrb[0].mxu0
  %v697 = vadd.f32 0.0, %v696
  %v698 = vpop.f32.mrb[0].mxu0
  %v699 = vpop.f32.mrb[0].mxu0
  %v700 = vadd.f32 0.0, %v699
  %v701 = vpop.f32.mrb[0].mxu0
  %702 = vmatprep.mubr.bf16.mxu0 0
  %703 = vmatmul.mubr.bf16.gmra.mrb[0].mxu0 %v426
  %v704 = vpop.f32.mrb[0].mxu0
  %v705 = vadd.f32 0.0, %v704
  %v706 = vpop.f32.mrb[0].mxu0
  %v707 = vpop.f32.mrb[0].mxu0
  %v708 = vadd.f32 0.0, %v707
  %v709 = vpop.f32.mrb[0].mxu0
  %710 = vmatprep.mubr.bf16.mxu0 0
  %711 = vmatmul.mubr.bf16.gmra.mrb[0].mxu0 %v429
  %v712 = vpop.f32.mrb[0].mxu0
  %v713 = vadd.f32 0.0, %v712
  %v714 = vpop.f32.mrb[0].mxu0
  %v715 = vpop.f32.mrb[0].mxu0
  %v716 = vadd.f32 0.0, %v715
  %v717 = vpop.f32.mrb[0].mxu0
  %718 = vmatprep.mubr.bf16.mxu0 0
  %719 = vmatmul.mubr.bf16.gmra.mrb[0].mxu0 %v432
  %v720 = vpop.f32.mrb[0].mxu0
  %v721 = vadd.f32 0.0, %v720
  %v722 = vpop.f32.mrb[0].mxu0
  %v723 = vpop.f32.mrb[0].mxu0
  %v724 = vadd.f32 0.0, %v723
  %v725 = vpop.f32.mrb[0].mxu0
  %726 = vdwg.mxu0
  %v732 = vunpack.c.l.b16 %v152
  %v733 = vunpack.c.l.b16 %v153
  %v734 = vunpack.c.l.b16 %v154
  %v735 = vunpack.c.l.b16 %v155
  %v736 = vunpack.c.l.b16 %v156
  %v737 = vpack.c.b16 %v733, %v732
  %v738 = vpack.c.b16 %v735, %v734
  %v739 = vpack.c.b16 %v736, %v736
  %v743 = vsel %vm434, %v739, 0
  %745 = vmatprep.subr.bf16.mxu0 0
  %746 = vmatpush1.bf16.msra.mxu0 %v737
  %747 = vmatprep.subr.bf16.mxu0 0
  %748 = vmatpush1.bf16.msra.mxu0 %v738
  %749 = vmatprep.subr.bf16.mxu0 0
  %750 = vmatpush1.bf16.msra.mxu0 %v743
  %751 = vmatprep.subr.bf16.mxu0 0
  %752 = vmatpush1.bf16.msra.mxu0 0
  %753 = vmatprep.subr.bf16.mxu0 0
  %754 = vmatpush1.bf16.msra.mxu0 0
  %755 = vmatprep.subr.bf16.mxu0 0
  %756 = vmatpush1.bf16.msra.mxu0 0
  %757 = vmatprep.subr.bf16.mxu0 0
  %758 = vmatpush1.bf16.msra.mxu0 0
  %759 = vmatprep.subr.bf16.mxu0 0
  %760 = vmatpush1.bf16.msra.mxu0 0
  %761 = vmatprep.subr.bf16.mxu0 0
  %762 = vmatpush1.bf16.msra.mxu0 0
  %763 = vmatprep.subr.bf16.mxu0 0
  %764 = vmatpush1.bf16.msra.mxu0 0
  %765 = vmatprep.subr.bf16.mxu0 0
  %766 = vmatpush1.bf16.msra.mxu0 0
  %767 = vmatprep.subr.bf16.mxu0 0
  %768 = vmatpush1.bf16.msra.mxu0 0
  %769 = vmatprep.subr.bf16.mxu0 0
  %770 = vmatpush1.bf16.msra.mxu0 0
  %771 = vmatprep.subr.bf16.mxu0 0
  %772 = vmatpush1.bf16.msra.mxu0 0
  %773 = vmatprep.subr.bf16.mxu0 0
  %774 = vmatpush1.bf16.msra.mxu0 0
  %775 = vmatprep.subr.bf16.mxu0 0
  %776 = vmatpush1.bf16.msra.mxu0 0
  %777 = vmatprep.mubr.bf16.mxu0 0
  %778 = vmatmul.mubr.bf16.gmra.mrb[0].mxu0 %v339
  %v779 = vpop.f32.mrb[0].mxu0
  %v780 = vadd.f32 %v473, %v779
  %v781 = vpop.f32.mrb[0].mxu0
  %v782 = vpop.f32.mrb[0].mxu0
  %v783 = vadd.f32 %v476, %v782
  %v784 = vpop.f32.mrb[0].mxu0
  %785 = vmatprep.mubr.bf16.mxu0 0
  %786 = vmatmul.mubr.bf16.gmra.mrb[0].mxu0 %v342
  %v787 = vpop.f32.mrb[0].mxu0
  %v788 = vadd.f32 %v481, %v787
  %v789 = vpop.f32.mrb[0].mxu0
  %v790 = vpop.f32.mrb[0].mxu0
  %v791 = vadd.f32 %v484, %v790
  %v792 = vpop.f32.mrb[0].mxu0
  %793 = vmatprep.mubr.bf16.mxu0 0
  %794 = vmatmul.mubr.bf16.gmra.mrb[0].mxu0 %v345
  %v795 = vpop.f32.mrb[0].mxu0
  %v796 = vadd.f32 %v489, %v795
  %v797 = vpop.f32.mrb[0].mxu0
  %v798 = vpop.f32.mrb[0].mxu0
  %v799 = vadd.f32 %v492, %v798
  %v800 = vpop.f32.mrb[0].mxu0
  %801 = vmatprep.mubr.bf16.mxu0 0
  %802 = vmatmul.mubr.bf16.gmra.mrb[0].mxu0 %v348
  %v803 = vpop.f32.mrb[0].mxu0
  %v804 = vadd.f32 %v497, %v803
  %v805 = vpop.f32.mrb[0].mxu0
  %v806 = vpop.f32.mrb[0].mxu0
  %v807 = vadd.f32 %v500, %v806
  %v808 = vpop.f32.mrb[0].mxu0
  %809 = vmatprep.mubr.bf16.mxu0 0
  %810 = vmatmul.mubr.bf16.gmra.mrb[0].mxu0 %v351
  %v811 = vpop.f32.mrb[0].mxu0
  %v812 = vadd.f32 %v505, %v811
  %v813 = vpop.f32.mrb[0].mxu0
  %v814 = vpop.f32.mrb[0].mxu0
  %v815 = vadd.f32 %v508, %v814
  %v816 = vpop.f32.mrb[0].mxu0
  %817 = vmatprep.mubr.bf16.mxu0 0
  %818 = vmatmul.mubr.bf16.gmra.mrb[0].mxu0 %v354
  %v819 = vpop.f32.mrb[0].mxu0
  %v820 = vadd.f32 %v513, %v819
  %v821 = vpop.f32.mrb[0].mxu0
  %v822 = vpop.f32.mrb[0].mxu0
  %v823 = vadd.f32 %v516, %v822
  %v824 = vpop.f32.mrb[0].mxu0
  %825 = vmatprep.mubr.bf16.mxu0 0
  %826 = vmatmul.mubr.bf16.gmra.mrb[0].mxu0 %v357
  %v827 = vpop.f32.mrb[0].mxu0
  %v828 = vadd.f32 %v521, %v827
  %v829 = vpop.f32.mrb[0].mxu0
  %v830 = vpop.f32.mrb[0].mxu0
  %v831 = vadd.f32 %v524, %v830
  %v832 = vpop.f32.mrb[0].mxu0
  %833 = vmatprep.mubr.bf16.mxu0 0
  %834 = vmatmul.mubr.bf16.gmra.mrb[0].mxu0 %v360
  %v835 = vpop.f32.mrb[0].mxu0
  %v836 = vadd.f32 %v529, %v835
  %v837 = vpop.f32.mrb[0].mxu0
  %v838 = vpop.f32.mrb[0].mxu0
  %v839 = vadd.f32 %v532, %v838
  %v840 = vpop.f32.mrb[0].mxu0
  %841 = vmatprep.mubr.bf16.mxu0 0
  %842 = vmatmul.mubr.bf16.gmra.mrb[0].mxu0 %v363
  %v843 = vpop.f32.mrb[0].mxu0
  %v844 = vadd.f32 %v537, %v843
  %v845 = vpop.f32.mrb[0].mxu0
  %v846 = vpop.f32.mrb[0].mxu0
  %v847 = vadd.f32 %v540, %v846
  %v848 = vpop.f32.mrb[0].mxu0
  %849 = vmatprep.mubr.bf16.mxu0 0
  %850 = vmatmul.mubr.bf16.gmra.mrb[0].mxu0 %v366
  %v851 = vpop.f32.mrb[0].mxu0
  %v852 = vadd.f32 %v545, %v851
  %v853 = vpop.f32.mrb[0].mxu0
  %v854 = vpop.f32.mrb[0].mxu0
  %v855 = vadd.f32 %v548, %v854
  %v856 = vpop.f32.mrb[0].mxu0
  %857 = vmatprep.mubr.bf16.mxu0 0
  %858 = vmatmul.mubr.bf16.gmra.mrb[0].mxu0 %v369
  %v859 = vpop.f32.mrb[0].mxu0
  %v860 = vadd.f32 %v553, %v859
  %v861 = vpop.f32.mrb[0].mxu0
  %v862 = vpop.f32.mrb[0].mxu0
  %v863 = vadd.f32 %v556, %v862
  %v864 = vpop.f32.mrb[0].mxu0
  %865 = vmatprep.mubr.bf16.mxu0 0
  %866 = vmatmul.mubr.bf16.gmra.mrb[0].mxu0 %v372
  %v867 = vpop.f32.mrb[0].mxu0
  %v868 = vadd.f32 %v561, %v867
  %v869 = vpop.f32.mrb[0].mxu0
  %v870 = vpop.f32.mrb[0].mxu0
  %v871 = vadd.f32 %v564, %v870
  %v872 = vpop.f32.mrb[0].mxu0
  %873 = vmatprep.mubr.bf16.mxu0 0
  %874 = vmatmul.mubr.bf16.gmra.mrb[0].mxu0 %v375
  %v875 = vpop.f32.mrb[0].mxu0
  %v876 = vadd.f32 %v569, %v875
  %v877 = vpop.f32.mrb[0].mxu0
  %v878 = vpop.f32.mrb[0].mxu0
  %v879 = vadd.f32 %v572, %v878
  %v880 = vpop.f32.mrb[0].mxu0
  %881 = vmatprep.mubr.bf16.mxu0 0
  %882 = vmatmul.mubr.bf16.gmra.mrb[0].mxu0 %v378
  %v883 = vpop.f32.mrb[0].mxu0
  %v884 = vadd.f32 %v577, %v883
  %v885 = vpop.f32.mrb[0].mxu0
  %v886 = vpop.f32.mrb[0].mxu0
  %v887 = vadd.f32 %v580, %v886
  %v888 = vpop.f32.mrb[0].mxu0
  %889 = vmatprep.mubr.bf16.mxu0 0
  %890 = vmatmul.mubr.bf16.gmra.mrb[0].mxu0 %v381
  %v891 = vpop.f32.mrb[0].mxu0
  %v892 = vadd.f32 %v585, %v891
  %v893 = vpop.f32.mrb[0].mxu0
  %v894 = vpop.f32.mrb[0].mxu0
  %v895 = vadd.f32 %v588, %v894
  %v896 = vpop.f32.mrb[0].mxu0
  %897 = vmatprep.mubr.bf16.mxu0 0
  %898 = vmatmul.mubr.bf16.gmra.mrb[0].mxu0 %v384
  %v899 = vpop.f32.mrb[0].mxu0
  %v900 = vadd.f32 %v593, %v899
  %v901 = vpop.f32.mrb[0].mxu0
  %v902 = vpop.f32.mrb[0].mxu0
  %v903 = vadd.f32 %v596, %v902
  %v904 = vpop.f32.mrb[0].mxu0
  %905 = vmatprep.mubr.bf16.mxu0 0
  %906 = vmatmul.mubr.bf16.gmra.mrb[0].mxu0 %v387
  %v907 = vpop.f32.mrb[0].mxu0
  %v908 = vadd.f32 %v601, %v907
  %v909 = vpop.f32.mrb[0].mxu0
  %v910 = vpop.f32.mrb[0].mxu0
  %v911 = vadd.f32 %v604, %v910
  %v912 = vpop.f32.mrb[0].mxu0
  %913 = vmatprep.mubr.bf16.mxu0 0
  %914 = vmatmul.mubr.bf16.gmra.mrb[0].mxu0 %v390
  %v915 = vpop.f32.mrb[0].mxu0
  %v916 = vadd.f32 %v609, %v915
  %v917 = vpop.f32.mrb[0].mxu0
  %v918 = vpop.f32.mrb[0].mxu0
  %v919 = vadd.f32 %v612, %v918
  %v920 = vpop.f32.mrb[0].mxu0
  %921 = vmatprep.mubr.bf16.mxu0 0
  %922 = vmatmul.mubr.bf16.gmra.mrb[0].mxu0 %v393
  %v923 = vpop.f32.mrb[0].mxu0
  %v924 = vadd.f32 %v617, %v923
  %v925 = vpop.f32.mrb[0].mxu0
  %v926 = vpop.f32.mrb[0].mxu0
  %v927 = vadd.f32 %v620, %v926
  %v928 = vpop.f32.mrb[0].mxu0
  %929 = vmatprep.mubr.bf16.mxu0 0
  %930 = vmatmul.mubr.bf16.gmra.mrb[0].mxu0 %v396
  %v931 = vpop.f32.mrb[0].mxu0
  %v932 = vadd.f32 %v625, %v931
  %v933 = vpop.f32.mrb[0].mxu0
  %v934 = vpop.f32.mrb[0].mxu0
  %v935 = vadd.f32 %v628, %v934
  %v936 = vpop.f32.mrb[0].mxu0
  %937 = vmatprep.mubr.bf16.mxu0 0
  %938 = vmatmul.mubr.bf16.gmra.mrb[0].mxu0 %v399
  %v939 = vpop.f32.mrb[0].mxu0
  %v940 = vadd.f32 %v633, %v939
  %v941 = vpop.f32.mrb[0].mxu0
  %v942 = vpop.f32.mrb[0].mxu0
  %v943 = vadd.f32 %v636, %v942
  %v944 = vpop.f32.mrb[0].mxu0
  %945 = vmatprep.mubr.bf16.mxu0 0
  %946 = vmatmul.mubr.bf16.gmra.mrb[0].mxu0 %v402
  %v947 = vpop.f32.mrb[0].mxu0
  %v948 = vadd.f32 %v641, %v947
  %v949 = vpop.f32.mrb[0].mxu0
  %v950 = vpop.f32.mrb[0].mxu0
  %v951 = vadd.f32 %v644, %v950
  %v952 = vpop.f32.mrb[0].mxu0
  %953 = vmatprep.mubr.bf16.mxu0 0
  %954 = vmatmul.mubr.bf16.gmra.mrb[0].mxu0 %v405
  %v955 = vpop.f32.mrb[0].mxu0
  %v956 = vadd.f32 %v649, %v955
  %v957 = vpop.f32.mrb[0].mxu0
  %v958 = vpop.f32.mrb[0].mxu0
  %v959 = vadd.f32 %v652, %v958
  %v960 = vpop.f32.mrb[0].mxu0
  %961 = vmatprep.mubr.bf16.mxu0 0
  %962 = vmatmul.mubr.bf16.gmra.mrb[0].mxu0 %v408
  %v963 = vpop.f32.mrb[0].mxu0
  %v964 = vadd.f32 %v657, %v963
  %v965 = vpop.f32.mrb[0].mxu0
  %v966 = vpop.f32.mrb[0].mxu0
  %v967 = vadd.f32 %v660, %v966
  %v968 = vpop.f32.mrb[0].mxu0
  %969 = vmatprep.mubr.bf16.mxu0 0
  %970 = vmatmul.mubr.bf16.gmra.mrb[0].mxu0 %v411
  %v971 = vpop.f32.mrb[0].mxu0
  %v972 = vadd.f32 %v665, %v971
  %v973 = vpop.f32.mrb[0].mxu0
  %v974 = vpop.f32.mrb[0].mxu0
  %v975 = vadd.f32 %v668, %v974
  %v976 = vpop.f32.mrb[0].mxu0
  %977 = vmatprep.mubr.bf16.mxu0 0
  %978 = vmatmul.mubr.bf16.gmra.mrb[0].mxu0 %v414
  %v979 = vpop.f32.mrb[0].mxu0
  %v980 = vadd.f32 %v673, %v979
  %v981 = vpop.f32.mrb[0].mxu0
  %v982 = vpop.f32.mrb[0].mxu0
  %v983 = vadd.f32 %v676, %v982
  %v984 = vpop.f32.mrb[0].mxu0
  %985 = vmatprep.mubr.bf16.mxu0 0
  %986 = vmatmul.mubr.bf16.gmra.mrb[0].mxu0 %v417
  %v987 = vpop.f32.mrb[0].mxu0
  %v988 = vadd.f32 %v681, %v987
  %v989 = vpop.f32.mrb[0].mxu0
  %v990 = vpop.f32.mrb[0].mxu0
  %v991 = vadd.f32 %v684, %v990
  %v992 = vpop.f32.mrb[0].mxu0
  %993 = vmatprep.mubr.bf16.mxu0 0
  %994 = vmatmul.mubr.bf16.gmra.mrb[0].mxu0 %v420
  %v995 = vpop.f32.mrb[0].mxu0
  %v996 = vadd.f32 %v689, %v995
  %v997 = vpop.f32.mrb[0].mxu0
  %v998 = vpop.f32.mrb[0].mxu0
  %v999 = vadd.f32 %v692, %v998
  %v1000 = vpop.f32.mrb[0].mxu0
  %1001 = vmatprep.mubr.bf16.mxu0 0
  %1002 = vmatmul.mubr.bf16.gmra.mrb[0].mxu0 %v423
  %v1003 = vpop.f32.mrb[0].mxu0
  %v1004 = vadd.f32 %v697, %v1003
  %v1005 = vpop.f32.mrb[0].mxu0
  %v1006 = vpop.f32.mrb[0].mxu0
  %v1007 = vadd.f32 %v700, %v1006
  %v1008 = vpop.f32.mrb[0].mxu0
  %1009 = vmatprep.mubr.bf16.mxu0 0
  %1010 = vmatmul.mubr.bf16.gmra.mrb[0].mxu0 %v426
  %v1011 = vpop.f32.mrb[0].mxu0
  %v1012 = vadd.f32 %v705, %v1011
  %v1013 = vpop.f32.mrb[0].mxu0
  %v1014 = vpop.f32.mrb[0].mxu0
  %v1015 = vadd.f32 %v708, %v1014
  %v1016 = vpop.f32.mrb[0].mxu0
  %1017 = vmatprep.mubr.bf16.mxu0 0
  %1018 = vmatmul.mubr.bf16.gmra.mrb[0].mxu0 %v429
  %v1019 = vpop.f32.mrb[0].mxu0
  %v1020 = vadd.f32 %v713, %v1019
  %v1021 = vpop.f32.mrb[0].mxu0
  %v1022 = vpop.f32.mrb[0].mxu0
  %v1023 = vadd.f32 %v716, %v1022
  %v1024 = vpop.f32.mrb[0].mxu0
  %1025 = vmatprep.mubr.bf16.mxu0 0
  %1026 = vmatmul.mubr.bf16.gmra.mrb[0].mxu0 %v432
  %v1027 = vpop.f32.mrb[0].mxu0
  %v1028 = vadd.f32 %v721, %v1027
  %v1029 = vpop.f32.mrb[0].mxu0
  %v1030 = vpop.f32.mrb[0].mxu0
  %v1031 = vadd.f32 %v724, %v1030
  %v1032 = vpop.f32.mrb[0].mxu0
  %1033 = vdwg.mxu0
  %v1098 = vunpack.c.l.b16 %v88
  %v1099 = vunpack.c.l.b16 %v89
  %v1100 = vunpack.c.l.b16 %v90
  %v1101 = vunpack.c.l.b16 %v91
  %v1102 = vunpack.c.l.b16 %v92
  %v1103 = vunpack.c.l.b16 %v93
  %v1104 = vunpack.c.l.b16 %v94
  %v1105 = vunpack.c.l.b16 %v95
  %v1106 = vunpack.c.l.b16 %v96
  %v1107 = vunpack.c.l.b16 %v97
  %v1108 = vunpack.c.l.b16 %v98
  %v1109 = vunpack.c.l.b16 %v99
  %v1110 = vunpack.c.l.b16 %v100
  %v1111 = vunpack.c.l.b16 %v101
  %v1112 = vunpack.c.l.b16 %v102
  %v1113 = vunpack.c.l.b16 %v103
  %v1114 = vunpack.c.l.b16 %v104
  %v1115 = vunpack.c.l.b16 %v105
  %v1116 = vunpack.c.l.b16 %v106
  %v1117 = vunpack.c.l.b16 %v107
  %v1118 = vunpack.c.l.b16 %v108
  %v1119 = vunpack.c.l.b16 %v109
  %v1120 = vunpack.c.l.b16 %v110
  %v1121 = vunpack.c.l.b16 %v111
  %v1122 = vunpack.c.l.b16 %v112
  %v1123 = vunpack.c.l.b16 %v113
  %v1124 = vunpack.c.l.b16 %v114
  %v1125 = vunpack.c.l.b16 %v115
  %v1126 = vunpack.c.l.b16 %v116
  %v1127 = vunpack.c.l.b16 %v117
  %v1128 = vunpack.c.l.b16 %v118
  %v1129 = vunpack.c.l.b16 %v119
  %v1130 = vunpack.c.l.b16 %v120
  %v1131 = vunpack.c.l.b16 %v121
  %v1132 = vunpack.c.l.b16 %v122
  %v1133 = vunpack.c.l.b16 %v123
  %v1134 = vunpack.c.l.b16 %v124
  %v1135 = vunpack.c.l.b16 %v125
  %v1136 = vunpack.c.l.b16 %v126
  %v1137 = vunpack.c.l.b16 %v127
  %v1138 = vunpack.c.l.b16 %v128
  %v1139 = vunpack.c.l.b16 %v129
  %v1140 = vunpack.c.l.b16 %v130
  %v1141 = vunpack.c.l.b16 %v131
  %v1142 = vunpack.c.l.b16 %v132
  %v1143 = vunpack.c.l.b16 %v133
  %v1144 = vunpack.c.l.b16 %v134
  %v1145 = vunpack.c.l.b16 %v135
  %v1146 = vunpack.c.l.b16 %v136
  %v1147 = vunpack.c.l.b16 %v137
  %v1148 = vunpack.c.l.b16 %v138
  %v1149 = vunpack.c.l.b16 %v139
  %v1150 = vunpack.c.l.b16 %v140
  %v1151 = vunpack.c.l.b16 %v141
  %v1152 = vunpack.c.l.b16 %v142
  %v1153 = vunpack.c.l.b16 %v143
  %v1154 = vunpack.c.l.b16 %v144
  %v1155 = vunpack.c.l.b16 %v145
  %v1156 = vunpack.c.l.b16 %v146
  %v1157 = vunpack.c.l.b16 %v147
  %v1158 = vunpack.c.l.b16 %v148
  %v1159 = vunpack.c.l.b16 %v149
  %v1160 = vunpack.c.l.b16 %v150
  %v1161 = vunpack.c.l.b16 %v151
  %v1162 = vpack.c.b16 %v1099, %v1098
  %v1163 = vpack.c.b16 %v1101, %v1100
  %v1164 = vpack.c.b16 %v1103, %v1102
  %v1165 = vpack.c.b16 %v1105, %v1104
  %v1166 = vpack.c.b16 %v1107, %v1106
  %v1167 = vpack.c.b16 %v1109, %v1108
  %v1168 = vpack.c.b16 %v1111, %v1110
  %v1169 = vpack.c.b16 %v1113, %v1112
  %v1170 = vpack.c.b16 %v1115, %v1114
  %v1171 = vpack.c.b16 %v1117, %v1116
  %v1172 = vpack.c.b16 %v1119, %v1118
  %v1173 = vpack.c.b16 %v1121, %v1120
  %v1174 = vpack.c.b16 %v1123, %v1122
  %v1175 = vpack.c.b16 %v1125, %v1124
  %v1176 = vpack.c.b16 %v1127, %v1126
  %v1177 = vpack.c.b16 %v1129, %v1128
  %v1178 = vpack.c.b16 %v1131, %v1130
  %v1179 = vpack.c.b16 %v1133, %v1132
  %v1180 = vpack.c.b16 %v1135, %v1134
  %v1181 = vpack.c.b16 %v1137, %v1136
  %v1182 = vpack.c.b16 %v1139, %v1138
  %v1183 = vpack.c.b16 %v1141, %v1140
  %v1184 = vpack.c.b16 %v1143, %v1142
  %v1185 = vpack.c.b16 %v1145, %v1144
  %v1186 = vpack.c.b16 %v1147, %v1146
  %v1187 = vpack.c.b16 %v1149, %v1148
  %v1188 = vpack.c.b16 %v1151, %v1150
  %v1189 = vpack.c.b16 %v1153, %v1152
  %v1190 = vpack.c.b16 %v1155, %v1154
  %v1191 = vpack.c.b16 %v1157, %v1156
  %v1192 = vpack.c.b16 %v1159, %v1158
  %v1193 = vpack.c.b16 %v1161, %v1160
  %v1195 = vsel %vm337, %v1162, 0
  %v1198 = vsel %vm337, %v1163, 0
  %v1201 = vsel %vm337, %v1164, 0
  %v1204 = vsel %vm337, %v1165, 0
  %v1207 = vsel %vm337, %v1166, 0
  %v1210 = vsel %vm337, %v1167, 0
  %v1213 = vsel %vm337, %v1168, 0
  %v1216 = vsel %vm337, %v1169, 0
  %v1219 = vsel %vm337, %v1170, 0
  %v1222 = vsel %vm337, %v1171, 0
  %v1225 = vsel %vm337, %v1172, 0
  %v1228 = vsel %vm337, %v1173, 0
  %v1231 = vsel %vm337, %v1174, 0
  %v1234 = vsel %vm337, %v1175, 0
  %v1237 = vsel %vm337, %v1176, 0
  %v1240 = vsel %vm337, %v1177, 0
  %v1243 = vsel %vm337, %v1178, 0
  %v1246 = vsel %vm337, %v1179, 0
  %v1249 = vsel %vm337, %v1180, 0
  %v1252 = vsel %vm337, %v1181, 0
  %v1255 = vsel %vm337, %v1182, 0
  %v1258 = vsel %vm337, %v1183, 0
  %v1261 = vsel %vm337, %v1184, 0
  %v1264 = vsel %vm337, %v1185, 0
  %v1267 = vsel %vm337, %v1186, 0
  %v1270 = vsel %vm337, %v1187, 0
  %v1273 = vsel %vm337, %v1188, 0
  %v1276 = vsel %vm337, %v1189, 0
  %v1279 = vsel %vm337, %v1190, 0
  %v1282 = vsel %vm337, %v1191, 0
  %v1285 = vsel %vm337, %v1192, 0
  %v1288 = vsel %vm337, %v1193, 0
  %1290 = vmatprep.subr.bf16.mxu0 0
  %1291 = vmatpush1.bf16.msra.mxu0 %v737
  %1292 = vmatprep.subr.bf16.mxu0 0
  %1293 = vmatpush1.bf16.msra.mxu0 %v738
  %1294 = vmatprep.subr.bf16.mxu0 0
  %1295 = vmatpush1.bf16.msra.mxu0 %v743
  %1296 = vmatprep.subr.bf16.mxu0 0
  %1297 = vmatpush1.bf16.msra.mxu0 0
  %1298 = vmatprep.subr.bf16.mxu0 0
  %1299 = vmatpush1.bf16.msra.mxu0 0
  %1300 = vmatprep.subr.bf16.mxu0 0
  %1301 = vmatpush1.bf16.msra.mxu0 0
  %1302 = vmatprep.subr.bf16.mxu0 0
  %1303 = vmatpush1.bf16.msra.mxu0 0
  %1304 = vmatprep.subr.bf16.mxu0 0
  %1305 = vmatpush1.bf16.msra.mxu0 0
  %1306 = vmatprep.subr.bf16.mxu0 0
  %1307 = vmatpush1.bf16.msra.mxu0 0
  %1308 = vmatprep.subr.bf16.mxu0 0
  %1309 = vmatpush1.bf16.msra.mxu0 0
  %1310 = vmatprep.subr.bf16.mxu0 0
  %1311 = vmatpush1.bf16.msra.mxu0 0
  %1312 = vmatprep.subr.bf16.mxu0 0
  %1313 = vmatpush1.bf16.msra.mxu0 0
  %1314 = vmatprep.subr.bf16.mxu0 0
  %1315 = vmatpush1.bf16.msra.mxu0 0
  %1316 = vmatprep.subr.bf16.mxu0 0
  %1317 = vmatpush1.bf16.msra.mxu0 0
  %1318 = vmatprep.subr.bf16.mxu0 0
  %1319 = vmatpush1.bf16.msra.mxu0 0
  %1320 = vmatprep.subr.bf16.mxu0 0
  %1321 = vmatpush1.bf16.msra.mxu0 0
  %1322 = vmatprep.mubr.bf16.mxu0 0
  %1323 = vmatmul.mubr.bf16.gmra.mrb[0].mxu0 %v1195
  %v1324 = vpop.f32.mrb[0].mxu0
  %v1325 = vadd.f32 0.0, %v1324
  %v1326 = vpop.f32.mrb[0].mxu0
  %v1327 = vpop.f32.mrb[0].mxu0
  %v1328 = vadd.f32 0.0, %v1327
  %v1329 = vpop.f32.mrb[0].mxu0
  %1330 = vmatprep.mubr.bf16.mxu0 0
  %1331 = vmatmul.mubr.bf16.gmra.mrb[0].mxu0 %v1198
  %v1332 = vpop.f32.mrb[0].mxu0
  %v1333 = vadd.f32 0.0, %v1332
  %v1334 = vpop.f32.mrb[0].mxu0
  %v1335 = vpop.f32.mrb[0].mxu0
  %v1336 = vadd.f32 0.0, %v1335
  %v1337 = vpop.f32.mrb[0].mxu0
  %1338 = vmatprep.mubr.bf16.mxu0 0
  %1339 = vmatmul.mubr.bf16.gmra.mrb[0].mxu0 %v1201
  %v1340 = vpop.f32.mrb[0].mxu0
  %v1341 = vadd.f32 0.0, %v1340
  %v1342 = vpop.f32.mrb[0].mxu0
  %v1343 = vpop.f32.mrb[0].mxu0
  %v1344 = vadd.f32 0.0, %v1343
  %v1345 = vpop.f32.mrb[0].mxu0
  %1346 = vmatprep.mubr.bf16.mxu0 0
  %1347 = vmatmul.mubr.bf16.gmra.mrb[0].mxu0 %v1204
  %v1348 = vpop.f32.mrb[0].mxu0
  %v1349 = vadd.f32 0.0, %v1348
  %v1350 = vpop.f32.mrb[0].mxu0
  %v1351 = vpop.f32.mrb[0].mxu0
  %v1352 = vadd.f32 0.0, %v1351
  %v1353 = vpop.f32.mrb[0].mxu0
  %1354 = vmatprep.mubr.bf16.mxu0 0
  %1355 = vmatmul.mubr.bf16.gmra.mrb[0].mxu0 %v1207
  %v1356 = vpop.f32.mrb[0].mxu0
  %v1357 = vadd.f32 0.0, %v1356
  %v1358 = vpop.f32.mrb[0].mxu0
  %v1359 = vpop.f32.mrb[0].mxu0
  %v1360 = vadd.f32 0.0, %v1359
  %v1361 = vpop.f32.mrb[0].mxu0
  %1362 = vmatprep.mubr.bf16.mxu0 0
  %1363 = vmatmul.mubr.bf16.gmra.mrb[0].mxu0 %v1210
  %v1364 = vpop.f32.mrb[0].mxu0
  %v1365 = vadd.f32 0.0, %v1364
  %v1366 = vpop.f32.mrb[0].mxu0
  %v1367 = vpop.f32.mrb[0].mxu0
  %v1368 = vadd.f32 0.0, %v1367
  %v1369 = vpop.f32.mrb[0].mxu0
  %1370 = vmatprep.mubr.bf16.mxu0 0
  %1371 = vmatmul.mubr.bf16.gmra.mrb[0].mxu0 %v1213
  %v1372 = vpop.f32.mrb[0].mxu0
  %v1373 = vadd.f32 0.0, %v1372
  %v1374 = vpop.f32.mrb[0].mxu0
  %v1375 = vpop.f32.mrb[0].mxu0
  %v1376 = vadd.f32 0.0, %v1375
  %v1377 = vpop.f32.mrb[0].mxu0
  %1378 = vmatprep.mubr.bf16.mxu0 0
  %1379 = vmatmul.mubr.bf16.gmra.mrb[0].mxu0 %v1216
  %v1380 = vpop.f32.mrb[0].mxu0
  %v1381 = vadd.f32 0.0, %v1380
  %v1382 = vpop.f32.mrb[0].mxu0
  %v1383 = vpop.f32.mrb[0].mxu0
  %v1384 = vadd.f32 0.0, %v1383
  %v1385 = vpop.f32.mrb[0].mxu0
  %1386 = vmatprep.mubr.bf16.mxu0 0
  %1387 = vmatmul.mubr.bf16.gmra.mrb[0].mxu0 %v1219
  %v1388 = vpop.f32.mrb[0].mxu0
  %v1389 = vadd.f32 0.0, %v1388
  %v1390 = vpop.f32.mrb[0].mxu0
  %v1391 = vpop.f32.mrb[0].mxu0
  %v1392 = vadd.f32 0.0, %v1391
  %v1393 = vpop.f32.mrb[0].mxu0
  %1394 = vmatprep.mubr.bf16.mxu0 0
  %1395 = vmatmul.mubr.bf16.gmra.mrb[0].mxu0 %v1222
  %v1396 = vpop.f32.mrb[0].mxu0
  %v1397 = vadd.f32 0.0, %v1396
  %v1398 = vpop.f32.mrb[0].mxu0
  %v1399 = vpop.f32.mrb[0].mxu0
  %v1400 = vadd.f32 0.0, %v1399
  %v1401 = vpop.f32.mrb[0].mxu0
  %1402 = vmatprep.mubr.bf16.mxu0 0
  %1403 = vmatmul.mubr.bf16.gmra.mrb[0].mxu0 %v1225
  %v1404 = vpop.f32.mrb[0].mxu0
  %v1405 = vadd.f32 0.0, %v1404
  %v1406 = vpop.f32.mrb[0].mxu0
  %v1407 = vpop.f32.mrb[0].mxu0
  %v1408 = vadd.f32 0.0, %v1407
  %v1409 = vpop.f32.mrb[0].mxu0
  %1410 = vmatprep.mubr.bf16.mxu0 0
  %1411 = vmatmul.mubr.bf16.gmra.mrb[0].mxu0 %v1228
  %v1412 = vpop.f32.mrb[0].mxu0
  %v1413 = vadd.f32 0.0, %v1412
  %v1414 = vpop.f32.mrb[0].mxu0
  %v1415 = vpop.f32.mrb[0].mxu0
  %v1416 = vadd.f32 0.0, %v1415
  %v1417 = vpop.f32.mrb[0].mxu0
  %1418 = vmatprep.mubr.bf16.mxu0 0
  %1419 = vmatmul.mubr.bf16.gmra.mrb[0].mxu0 %v1231
  %v1420 = vpop.f32.mrb[0].mxu0
  %v1421 = vadd.f32 0.0, %v1420
  %v1422 = vpop.f32.mrb[0].mxu0
  %v1423 = vpop.f32.mrb[0].mxu0
  %v1424 = vadd.f32 0.0, %v1423
  %v1425 = vpop.f32.mrb[0].mxu0
  %1426 = vmatprep.mubr.bf16.mxu0 0
  %1427 = vmatmul.mubr.bf16.gmra.mrb[0].mxu0 %v1234
  %v1428 = vpop.f32.mrb[0].mxu0
  %v1429 = vadd.f32 0.0, %v1428
  %v1430 = vpop.f32.mrb[0].mxu0
  %v1431 = vpop.f32.mrb[0].mxu0
  %v1432 = vadd.f32 0.0, %v1431
  %v1433 = vpop.f32.mrb[0].mxu0
  %1434 = vmatprep.mubr.bf16.mxu0 0
  %1435 = vmatmul.mubr.bf16.gmra.mrb[0].mxu0 %v1237
  %v1436 = vpop.f32.mrb[0].mxu0
  %v1437 = vadd.f32 0.0, %v1436
  %v1438 = vpop.f32.mrb[0].mxu0
  %v1439 = vpop.f32.mrb[0].mxu0
  %v1440 = vadd.f32 0.0, %v1439
  %v1441 = vpop.f32.mrb[0].mxu0
  %1442 = vmatprep.mubr.bf16.mxu0 0
  %1443 = vmatmul.mubr.bf16.gmra.mrb[0].mxu0 %v1240
  %v1444 = vpop.f32.mrb[0].mxu0
  %v1445 = vadd.f32 0.0, %v1444
  %v1446 = vpop.f32.mrb[0].mxu0
  %v1447 = vpop.f32.mrb[0].mxu0
  %v1448 = vadd.f32 0.0, %v1447
  %v1449 = vpop.f32.mrb[0].mxu0
  %1450 = vmatprep.mubr.bf16.mxu0 0
  %1451 = vmatmul.mubr.bf16.gmra.mrb[0].mxu0 %v1243
  %v1452 = vpop.f32.mrb[0].mxu0
  %v1453 = vadd.f32 0.0, %v1452
  %v1454 = vpop.f32.mrb[0].mxu0
  %v1455 = vpop.f32.mrb[0].mxu0
  %v1456 = vadd.f32 0.0, %v1455
  %v1457 = vpop.f32.mrb[0].mxu0
  %1458 = vmatprep.mubr.bf16.mxu0 0
  %1459 = vmatmul.mubr.bf16.gmra.mrb[0].mxu0 %v1246
  %v1460 = vpop.f32.mrb[0].mxu0
  %v1461 = vadd.f32 0.0, %v1460
  %v1462 = vpop.f32.mrb[0].mxu0
  %v1463 = vpop.f32.mrb[0].mxu0
  %v1464 = vadd.f32 0.0, %v1463
  %v1465 = vpop.f32.mrb[0].mxu0
  %1466 = vmatprep.mubr.bf16.mxu0 0
  %1467 = vmatmul.mubr.bf16.gmra.mrb[0].mxu0 %v1249
  %v1468 = vpop.f32.mrb[0].mxu0
  %v1469 = vadd.f32 0.0, %v1468
  %v1470 = vpop.f32.mrb[0].mxu0
  %v1471 = vpop.f32.mrb[0].mxu0
  %v1472 = vadd.f32 0.0, %v1471
  %v1473 = vpop.f32.mrb[0].mxu0
  %1474 = vmatprep.mubr.bf16.mxu0 0
  %1475 = vmatmul.mubr.bf16.gmra.mrb[0].mxu0 %v1252
  %v1476 = vpop.f32.mrb[0].mxu0
  %v1477 = vadd.f32 0.0, %v1476
  %v1478 = vpop.f32.mrb[0].mxu0
  %v1479 = vpop.f32.mrb[0].mxu0
  %v1480 = vadd.f32 0.0, %v1479
  %v1481 = vpop.f32.mrb[0].mxu0
  %1482 = vmatprep.mubr.bf16.mxu0 0
  %1483 = vmatmul.mubr.bf16.gmra.mrb[0].mxu0 %v1255
  %v1484 = vpop.f32.mrb[0].mxu0
  %v1485 = vadd.f32 0.0, %v1484
  %v1486 = vpop.f32.mrb[0].mxu0
  %v1487 = vpop.f32.mrb[0].mxu0
  %v1488 = vadd.f32 0.0, %v1487
  %v1489 = vpop.f32.mrb[0].mxu0
  %1490 = vmatprep.mubr.bf16.mxu0 0
  %1491 = vmatmul.mubr.bf16.gmra.mrb[0].mxu0 %v1258
  %v1492 = vpop.f32.mrb[0].mxu0
  %v1493 = vadd.f32 0.0, %v1492
  %v1494 = vpop.f32.mrb[0].mxu0
  %v1495 = vpop.f32.mrb[0].mxu0
  %v1496 = vadd.f32 0.0, %v1495
  %v1497 = vpop.f32.mrb[0].mxu0
  %1498 = vmatprep.mubr.bf16.mxu0 0
  %1499 = vmatmul.mubr.bf16.gmra.mrb[0].mxu0 %v1261
  %v1500 = vpop.f32.mrb[0].mxu0
  %v1501 = vadd.f32 0.0, %v1500
  %v1502 = vpop.f32.mrb[0].mxu0
  %v1503 = vpop.f32.mrb[0].mxu0
  %v1504 = vadd.f32 0.0, %v1503
  %v1505 = vpop.f32.mrb[0].mxu0
  %1506 = vmatprep.mubr.bf16.mxu0 0
  %1507 = vmatmul.mubr.bf16.gmra.mrb[0].mxu0 %v1264
  %v1508 = vpop.f32.mrb[0].mxu0
  %v1509 = vadd.f32 0.0, %v1508
  %v1510 = vpop.f32.mrb[0].mxu0
  %v1511 = vpop.f32.mrb[0].mxu0
  %v1512 = vadd.f32 0.0, %v1511
  %v1513 = vpop.f32.mrb[0].mxu0
  %1514 = vmatprep.mubr.bf16.mxu0 0
  %1515 = vmatmul.mubr.bf16.gmra.mrb[0].mxu0 %v1267
  %v1516 = vpop.f32.mrb[0].mxu0
  %v1517 = vadd.f32 0.0, %v1516
  %v1518 = vpop.f32.mrb[0].mxu0
  %v1519 = vpop.f32.mrb[0].mxu0
  %v1520 = vadd.f32 0.0, %v1519
  %v1521 = vpop.f32.mrb[0].mxu0
  %1522 = vmatprep.mubr.bf16.mxu0 0
  %1523 = vmatmul.mubr.bf16.gmra.mrb[0].mxu0 %v1270
  %v1524 = vpop.f32.mrb[0].mxu0
  %v1525 = vadd.f32 0.0, %v1524
  %v1526 = vpop.f32.mrb[0].mxu0
  %v1527 = vpop.f32.mrb[0].mxu0
  %v1528 = vadd.f32 0.0, %v1527
  %v1529 = vpop.f32.mrb[0].mxu0
  %1530 = vmatprep.mubr.bf16.mxu0 0
  %1531 = vmatmul.mubr.bf16.gmra.mrb[0].mxu0 %v1273
  %v1532 = vpop.f32.mrb[0].mxu0
  %v1533 = vadd.f32 0.0, %v1532
  %v1534 = vpop.f32.mrb[0].mxu0
  %v1535 = vpop.f32.mrb[0].mxu0
  %v1536 = vadd.f32 0.0, %v1535
  %v1537 = vpop.f32.mrb[0].mxu0
  %1538 = vmatprep.mubr.bf16.mxu0 0
  %1539 = vmatmul.mubr.bf16.gmra.mrb[0].mxu0 %v1276
  %v1540 = vpop.f32.mrb[0].mxu0
  %v1541 = vadd.f32 0.0, %v1540
  %v1542 = vpop.f32.mrb[0].mxu0
  %v1543 = vpop.f32.mrb[0].mxu0
  %v1544 = vadd.f32 0.0, %v1543
  %v1545 = vpop.f32.mrb[0].mxu0
  %1546 = vmatprep.mubr.bf16.mxu0 0
  %1547 = vmatmul.mubr.bf16.gmra.mrb[0].mxu0 %v1279
  %v1548 = vpop.f32.mrb[0].mxu0
  %v1549 = vadd.f32 0.0, %v1548
  %v1550 = vpop.f32.mrb[0].mxu0
  %v1551 = vpop.f32.mrb[0].mxu0
  %v1552 = vadd.f32 0.0, %v1551
  %v1553 = vpop.f32.mrb[0].mxu0
  %1554 = vmatprep.mubr.bf16.mxu0 0
  %1555 = vmatmul.mubr.bf16.gmra.mrb[0].mxu0 %v1282
  %v1556 = vpop.f32.mrb[0].mxu0
  %v1557 = vadd.f32 0.0, %v1556
  %v1558 = vpop.f32.mrb[0].mxu0
  %v1559 = vpop.f32.mrb[0].mxu0
  %v1560 = vadd.f32 0.0, %v1559
  %v1561 = vpop.f32.mrb[0].mxu0
  %1562 = vmatprep.mubr.bf16.mxu0 0
  %1563 = vmatmul.mubr.bf16.gmra.mrb[0].mxu0 %v1285
  %v1564 = vpop.f32.mrb[0].mxu0
  %v1565 = vadd.f32 0.0, %v1564
  %v1566 = vpop.f32.mrb[0].mxu0
  %v1567 = vpop.f32.mrb[0].mxu0
  %v1568 = vadd.f32 0.0, %v1567
  %v1569 = vpop.f32.mrb[0].mxu0
  %1570 = vmatprep.mubr.bf16.mxu0 0
  %1571 = vmatmul.mubr.bf16.gmra.mrb[0].mxu0 %v1288
  %v1572 = vpop.f32.mrb[0].mxu0
  %v1573 = vadd.f32 0.0, %v1572
  %v1574 = vpop.f32.mrb[0].mxu0
  %v1575 = vpop.f32.mrb[0].mxu0
  %v1576 = vadd.f32 0.0, %v1575
  %v1577 = vpop.f32.mrb[0].mxu0
  %1578 = vdwg.mxu0
  %v1579 = vadd.f32 %v780, %v1325
  %v1580 = vadd.f32 %v783, %v1328
  %v1581 = vadd.f32 %v788, %v1333
  %v1582 = vadd.f32 %v791, %v1336
  %v1583 = vadd.f32 %v796, %v1341
  %v1584 = vadd.f32 %v799, %v1344
  %v1585 = vadd.f32 %v804, %v1349
  %v1586 = vadd.f32 %v807, %v1352
  %v1587 = vadd.f32 %v812, %v1357
  %v1588 = vadd.f32 %v815, %v1360
  %v1589 = vadd.f32 %v820, %v1365
  %v1590 = vadd.f32 %v823, %v1368
  %v1591 = vadd.f32 %v828, %v1373
  %v1592 = vadd.f32 %v831, %v1376
  %v1593 = vadd.f32 %v836, %v1381
  %v1594 = vadd.f32 %v839, %v1384
  %v1595 = vadd.f32 %v844, %v1389
  %v1596 = vadd.f32 %v847, %v1392
  %v1597 = vadd.f32 %v852, %v1397
  %v1598 = vadd.f32 %v855, %v1400
  %v1599 = vadd.f32 %v860, %v1405
  %v1600 = vadd.f32 %v863, %v1408
  %v1601 = vadd.f32 %v868, %v1413
  %v1602 = vadd.f32 %v871, %v1416
  %v1603 = vadd.f32 %v876, %v1421
  %v1604 = vadd.f32 %v879, %v1424
  %v1605 = vadd.f32 %v884, %v1429
  %v1606 = vadd.f32 %v887, %v1432
  %v1607 = vadd.f32 %v892, %v1437
  %v1608 = vadd.f32 %v895, %v1440
  %v1609 = vadd.f32 %v900, %v1445
  %v1610 = vadd.f32 %v903, %v1448
  %v1611 = vadd.f32 %v908, %v1453
  %v1612 = vadd.f32 %v911, %v1456
  %v1613 = vadd.f32 %v916, %v1461
  %v1614 = vadd.f32 %v919, %v1464
  %v1615 = vadd.f32 %v924, %v1469
  %v1616 = vadd.f32 %v927, %v1472
  %v1617 = vadd.f32 %v932, %v1477
  %v1618 = vadd.f32 %v935, %v1480
  %v1619 = vadd.f32 %v940, %v1485
  %v1620 = vadd.f32 %v943, %v1488
  %v1621 = vadd.f32 %v948, %v1493
  %v1622 = vadd.f32 %v951, %v1496
  %v1623 = vadd.f32 %v956, %v1501
  %v1624 = vadd.f32 %v959, %v1504
  %v1625 = vadd.f32 %v964, %v1509
  %v1626 = vadd.f32 %v967, %v1512
  %v1627 = vadd.f32 %v972, %v1517
  %v1628 = vadd.f32 %v975, %v1520
  %v1629 = vadd.f32 %v980, %v1525
  %v1630 = vadd.f32 %v983, %v1528
  %v1631 = vadd.f32 %v988, %v1533
  %v1632 = vadd.f32 %v991, %v1536
  %v1633 = vadd.f32 %v996, %v1541
  %v1634 = vadd.f32 %v999, %v1544
  %v1635 = vadd.f32 %v1004, %v1549
  %v1636 = vadd.f32 %v1007, %v1552
  %v1637 = vadd.f32 %v1012, %v1557
  %v1638 = vadd.f32 %v1015, %v1560
  %v1639 = vadd.f32 %v1020, %v1565
  %v1640 = vadd.f32 %v1023, %v1568
  %v1641 = vadd.f32 %v1028, %v1573
  %v1642 = vadd.f32 %v1031, %v1576
  %vm1643 = vcmask 523264
  %v1644 = vsel %vm1643, %v1579, 0.0
  %v1645 = vsel %vm1643, %v1580, 0.0
  %v1646 = vadd.f32 %v1644, %v1645
  %v1647 = vsel %vm1643, %v1581, 0.0
  %v1648 = vadd.f32 %v1646, %v1647
  %v1649 = vsel %vm1643, %v1582, 0.0
  %v1650 = vadd.f32 %v1648, %v1649
  %v1651 = vsel %vm1643, %v1583, 0.0
  %v1652 = vadd.f32 %v1650, %v1651
  %v1653 = vsel %vm1643, %v1584, 0.0
  %v1654 = vadd.f32 %v1652, %v1653
  %v1655 = vsel %vm1643, %v1585, 0.0
  %v1656 = vadd.f32 %v1654, %v1655
  %v1657 = vsel %vm1643, %v1586, 0.0
  %v1658 = vadd.f32 %v1656, %v1657
  %v1659 = vsel %vm1643, %v1587, 0.0
  %v1660 = vadd.f32 %v1658, %v1659
  %v1661 = vsel %vm1643, %v1588, 0.0
  %v1662 = vadd.f32 %v1660, %v1661
  %v1663 = vsel %vm1643, %v1589, 0.0
  %v1664 = vadd.f32 %v1662, %v1663
  %v1665 = vsel %vm1643, %v1590, 0.0
  %v1666 = vadd.f32 %v1664, %v1665
  %v1667 = vsel %vm1643, %v1591, 0.0
  %v1668 = vadd.f32 %v1666, %v1667
  %v1669 = vsel %vm1643, %v1592, 0.0
  %v1670 = vadd.f32 %v1668, %v1669
  %v1671 = vsel %vm1643, %v1593, 0.0
  %v1672 = vadd.f32 %v1670, %v1671
  %v1673 = vsel %vm1643, %v1594, 0.0
  %v1674 = vadd.f32 %v1672, %v1673
  %v1675 = vsel %vm1643, %v1595, 0.0
  %v1676 = vadd.f32 %v1674, %v1675
  %v1677 = vsel %vm1643, %v1596, 0.0
  %v1678 = vadd.f32 %v1676, %v1677
  %v1679 = vsel %vm1643, %v1597, 0.0
  %v1680 = vadd.f32 %v1678, %v1679
  %v1681 = vsel %vm1643, %v1598, 0.0
  %v1682 = vadd.f32 %v1680, %v1681
  %v1683 = vsel %vm1643, %v1599, 0.0
  %v1684 = vadd.f32 %v1682, %v1683
  %v1685 = vsel %vm1643, %v1600, 0.0
  %v1686 = vadd.f32 %v1684, %v1685
  %v1687 = vsel %vm1643, %v1601, 0.0
  %v1688 = vadd.f32 %v1686, %v1687
  %v1689 = vsel %vm1643, %v1602, 0.0
  %v1690 = vadd.f32 %v1688, %v1689
  %v1691 = vsel %vm1643, %v1603, 0.0
  %v1692 = vadd.f32 %v1690, %v1691
  %v1693 = vsel %vm1643, %v1604, 0.0
  %v1694 = vadd.f32 %v1692, %v1693
  %v1695 = vsel %vm1643, %v1605, 0.0
  %v1696 = vadd.f32 %v1694, %v1695
  %v1697 = vsel %vm1643, %v1606, 0.0
  %v1698 = vadd.f32 %v1696, %v1697
  %v1699 = vsel %vm1643, %v1607, 0.0
  %v1700 = vadd.f32 %v1698, %v1699
  %v1701 = vsel %vm1643, %v1608, 0.0
  %v1702 = vadd.f32 %v1700, %v1701
  %v1703 = vsel %vm1643, %v1609, 0.0
  %v1704 = vadd.f32 %v1702, %v1703
  %v1705 = vsel %vm1643, %v1610, 0.0
  %v1706 = vadd.f32 %v1704, %v1705
  %v1707 = vsel %vm1643, %v1611, 0.0
  %v1708 = vadd.f32 %v1706, %v1707
  %v1709 = vsel %vm1643, %v1612, 0.0
  %v1710 = vadd.f32 %v1708, %v1709
  %v1711 = vsel %vm1643, %v1613, 0.0
  %v1712 = vadd.f32 %v1710, %v1711
  %v1713 = vsel %vm1643, %v1614, 0.0
  %v1714 = vadd.f32 %v1712, %v1713
  %v1715 = vsel %vm1643, %v1615, 0.0
  %v1716 = vadd.f32 %v1714, %v1715
  %v1717 = vsel %vm1643, %v1616, 0.0
  %v1718 = vadd.f32 %v1716, %v1717
  %v1719 = vsel %vm1643, %v1617, 0.0
  %v1720 = vadd.f32 %v1718, %v1719
  %v1721 = vsel %vm1643, %v1618, 0.0
  %v1722 = vadd.f32 %v1720, %v1721
  %v1723 = vsel %vm1643, %v1619, 0.0
  %v1724 = vadd.f32 %v1722, %v1723
  %v1725 = vsel %vm1643, %v1620, 0.0
  %v1726 = vadd.f32 %v1724, %v1725
  %v1727 = vsel %vm1643, %v1621, 0.0
  %v1728 = vadd.f32 %v1726, %v1727
  %v1729 = vsel %vm1643, %v1622, 0.0
  %v1730 = vadd.f32 %v1728, %v1729
  %v1731 = vsel %vm1643, %v1623, 0.0
  %v1732 = vadd.f32 %v1730, %v1731
  %v1733 = vsel %vm1643, %v1624, 0.0
  %v1734 = vadd.f32 %v1732, %v1733
  %v1735 = vsel %vm1643, %v1625, 0.0
  %v1736 = vadd.f32 %v1734, %v1735
  %v1737 = vsel %vm1643, %v1626, 0.0
  %v1738 = vadd.f32 %v1736, %v1737
  %v1739 = vsel %vm1643, %v1627, 0.0
  %v1740 = vadd.f32 %v1738, %v1739
  %v1741 = vsel %vm1643, %v1628, 0.0
  %v1742 = vadd.f32 %v1740, %v1741
  %v1743 = vsel %vm1643, %v1629, 0.0
  %v1744 = vadd.f32 %v1742, %v1743
  %v1745 = vsel %vm1643, %v1630, 0.0
  %v1746 = vadd.f32 %v1744, %v1745
  %v1747 = vsel %vm1643, %v1631, 0.0
  %v1748 = vadd.f32 %v1746, %v1747
  %v1749 = vsel %vm1643, %v1632, 0.0
  %v1750 = vadd.f32 %v1748, %v1749
  %v1751 = vsel %vm1643, %v1633, 0.0
  %v1752 = vadd.f32 %v1750, %v1751
  %v1753 = vsel %vm1643, %v1634, 0.0
  %v1754 = vadd.f32 %v1752, %v1753
  %v1755 = vsel %vm1643, %v1635, 0.0
  %v1756 = vadd.f32 %v1754, %v1755
  %v1757 = vsel %vm1643, %v1636, 0.0
  %v1758 = vadd.f32 %v1756, %v1757
  %v1759 = vsel %vm1643, %v1637, 0.0
  %v1760 = vadd.f32 %v1758, %v1759
  %v1761 = vsel %vm1643, %v1638, 0.0
  %v1762 = vadd.f32 %v1760, %v1761
  %v1763 = vsel %vm1643, %v1639, 0.0
  %v1764 = vadd.f32 %v1762, %v1763
  %v1765 = vsel %vm1643, %v1640, 0.0
  %v1766 = vadd.f32 %v1764, %v1765
  %v1767 = vsel %vm1643, %v1641, 0.0
  %v1768 = vadd.f32 %v1766, %v1767
  %v1769 = vsel %vm1643, %v1642, 0.0
  %v1770 = vadd.f32 %v1768, %v1769
  %v1771 = vrot.slane %v1770, 4
  %v1772 = vadd.f32 %v1770, %v1771
  %v1773 = vrot.slane %v1772, 2
  %v1774 = vadd.f32 %v1772, %v1773
  %v1775 = vrot.slane %v1774, 1
  %v1776 = vadd.f32 %v1774, %v1775
  %v1777 = vrcp.pop 512.0
  %v1778 = vmul.f32 %v1776, %v1777
  %v1779 = vsub.f32 %v1579, %v1778
  %v1780 = vsub.f32 %v1580, %v1778
  %v1781 = vsub.f32 %v1581, %v1778
  %v1782 = vsub.f32 %v1582, %v1778
  %v1783 = vsub.f32 %v1583, %v1778
  %v1784 = vsub.f32 %v1584, %v1778
  %v1785 = vsub.f32 %v1585, %v1778
  %v1786 = vsub.f32 %v1586, %v1778
  %v1787 = vsub.f32 %v1587, %v1778
  %v1788 = vsub.f32 %v1588, %v1778
  %v1789 = vsub.f32 %v1589, %v1778
  %v1790 = vsub.f32 %v1590, %v1778
  %v1791 = vsub.f32 %v1591, %v1778
  %v1792 = vsub.f32 %v1592, %v1778
  %v1793 = vsub.f32 %v1593, %v1778
  %v1794 = vsub.f32 %v1594, %v1778
  %v1795 = vsub.f32 %v1595, %v1778
  %v1796 = vsub.f32 %v1596, %v1778
  %v1797 = vsub.f32 %v1597, %v1778
  %v1798 = vsub.f32 %v1598, %v1778
  %v1799 = vsub.f32 %v1599, %v1778
  %v1800 = vsub.f32 %v1600, %v1778
  %v1801 = vsub.f32 %v1601, %v1778
  %v1802 = vsub.f32 %v1602, %v1778
  %v1803 = vsub.f32 %v1603, %v1778
  %v1804 = vsub.f32 %v1604, %v1778
  %v1805 = vsub.f32 %v1605, %v1778
  %v1806 = vsub.f32 %v1606, %v1778
  %v1807 = vsub.f32 %v1607, %v1778
  %v1808 = vsub.f32 %v1608, %v1778
  %v1809 = vsub.f32 %v1609, %v1778
  %v1810 = vsub.f32 %v1610, %v1778
  %v1811 = vsub.f32 %v1611, %v1778
  %v1812 = vsub.f32 %v1612, %v1778
  %v1813 = vsub.f32 %v1613, %v1778
  %v1814 = vsub.f32 %v1614, %v1778
  %v1815 = vsub.f32 %v1615, %v1778
  %v1816 = vsub.f32 %v1616, %v1778
  %v1817 = vsub.f32 %v1617, %v1778
  %v1818 = vsub.f32 %v1618, %v1778
  %v1819 = vsub.f32 %v1619, %v1778
  %v1820 = vsub.f32 %v1620, %v1778
  %v1821 = vsub.f32 %v1621, %v1778
  %v1822 = vsub.f32 %v1622, %v1778
  %v1823 = vsub.f32 %v1623, %v1778
  %v1824 = vsub.f32 %v1624, %v1778
  %v1825 = vsub.f32 %v1625, %v1778
  %v1826 = vsub.f32 %v1626, %v1778
  %v1827 = vsub.f32 %v1627, %v1778
  %v1828 = vsub.f32 %v1628, %v1778
  %v1829 = vsub.f32 %v1629, %v1778
  %v1830 = vsub.f32 %v1630, %v1778
  %v1831 = vsub.f32 %v1631, %v1778
  %v1832 = vsub.f32 %v1632, %v1778
  %v1833 = vsub.f32 %v1633, %v1778
  %v1834 = vsub.f32 %v1634, %v1778
  %v1835 = vsub.f32 %v1635, %v1778
  %v1836 = vsub.f32 %v1636, %v1778
  %v1837 = vsub.f32 %v1637, %v1778
  %v1838 = vsub.f32 %v1638, %v1778
  %v1839 = vsub.f32 %v1639, %v1778
  %v1840 = vsub.f32 %v1640, %v1778
  %v1841 = vsub.f32 %v1641, %v1778
  %v1842 = vsub.f32 %v1642, %v1778
  %v1843 = vmul.f32 %v1779, %v1779
  %v1844 = vmul.f32 %v1780, %v1780
  %v1845 = vmul.f32 %v1781, %v1781
  %v1846 = vmul.f32 %v1782, %v1782
  %v1847 = vmul.f32 %v1783, %v1783
  %v1848 = vmul.f32 %v1784, %v1784
  %v1849 = vmul.f32 %v1785, %v1785
  %v1850 = vmul.f32 %v1786, %v1786
  %v1851 = vmul.f32 %v1787, %v1787
  %v1852 = vmul.f32 %v1788, %v1788
  %v1853 = vmul.f32 %v1789, %v1789
  %v1854 = vmul.f32 %v1790, %v1790
  %v1855 = vmul.f32 %v1791, %v1791
  %v1856 = vmul.f32 %v1792, %v1792
  %v1857 = vmul.f32 %v1793, %v1793
  %v1858 = vmul.f32 %v1794, %v1794
  %v1859 = vmul.f32 %v1795, %v1795
  %v1860 = vmul.f32 %v1796, %v1796
  %v1861 = vmul.f32 %v1797, %v1797
  %v1862 = vmul.f32 %v1798, %v1798
  %v1863 = vmul.f32 %v1799, %v1799
  %v1864 = vmul.f32 %v1800, %v1800
  %v1865 = vmul.f32 %v1801, %v1801
  %v1866 = vmul.f32 %v1802, %v1802
  %v1867 = vmul.f32 %v1803, %v1803
  %v1868 = vmul.f32 %v1804, %v1804
  %v1869 = vmul.f32 %v1805, %v1805
  %v1870 = vmul.f32 %v1806, %v1806
  %v1871 = vmul.f32 %v1807, %v1807
  %v1872 = vmul.f32 %v1808, %v1808
  %v1873 = vmul.f32 %v1809, %v1809
  %v1874 = vmul.f32 %v1810, %v1810
  %v1875 = vmul.f32 %v1811, %v1811
  %v1876 = vmul.f32 %v1812, %v1812
  %v1877 = vmul.f32 %v1813, %v1813
  %v1878 = vmul.f32 %v1814, %v1814
  %v1879 = vmul.f32 %v1815, %v1815
  %v1880 = vmul.f32 %v1816, %v1816
  %v1881 = vmul.f32 %v1817, %v1817
  %v1882 = vmul.f32 %v1818, %v1818
  %v1883 = vmul.f32 %v1819, %v1819
  %v1884 = vmul.f32 %v1820, %v1820
  %v1885 = vmul.f32 %v1821, %v1821
  %v1886 = vmul.f32 %v1822, %v1822
  %v1887 = vmul.f32 %v1823, %v1823
  %v1888 = vmul.f32 %v1824, %v1824
  %v1889 = vmul.f32 %v1825, %v1825
  %v1890 = vmul.f32 %v1826, %v1826
  %v1891 = vmul.f32 %v1827, %v1827
  %v1892 = vmul.f32 %v1828, %v1828
  %v1893 = vmul.f32 %v1829, %v1829
  %v1894 = vmul.f32 %v1830, %v1830
  %v1895 = vmul.f32 %v1831, %v1831
  %v1896 = vmul.f32 %v1832, %v1832
  %v1897 = vmul.f32 %v1833, %v1833
  %v1898 = vmul.f32 %v1834, %v1834
  %v1899 = vmul.f32 %v1835, %v1835
  %v1900 = vmul.f32 %v1836, %v1836
  %v1901 = vmul.f32 %v1837, %v1837
  %v1902 = vmul.f32 %v1838, %v1838
  %v1903 = vmul.f32 %v1839, %v1839
  %v1904 = vmul.f32 %v1840, %v1840
  %v1905 = vmul.f32 %v1841, %v1841
  %v1906 = vmul.f32 %v1842, %v1842
  %v1907 = vsel %vm1643, %v1843, 0.0
  %v1908 = vsel %vm1643, %v1844, 0.0
  %v1909 = vadd.f32 %v1907, %v1908
  %v1910 = vsel %vm1643, %v1845, 0.0
  %v1911 = vadd.f32 %v1909, %v1910
  %v1912 = vsel %vm1643, %v1846, 0.0
  %v1913 = vadd.f32 %v1911, %v1912
  %v1914 = vsel %vm1643, %v1847, 0.0
  %v1915 = vadd.f32 %v1913, %v1914
  %v1916 = vsel %vm1643, %v1848, 0.0
  %v1917 = vadd.f32 %v1915, %v1916
  %v1918 = vsel %vm1643, %v1849, 0.0
  %v1919 = vadd.f32 %v1917, %v1918
  %v1920 = vsel %vm1643, %v1850, 0.0
  %v1921 = vadd.f32 %v1919, %v1920
  %v1922 = vsel %vm1643, %v1851, 0.0
  %v1923 = vadd.f32 %v1921, %v1922
  %v1924 = vsel %vm1643, %v1852, 0.0
  %v1925 = vadd.f32 %v1923, %v1924
  %v1926 = vsel %vm1643, %v1853, 0.0
  %v1927 = vadd.f32 %v1925, %v1926
  %v1928 = vsel %vm1643, %v1854, 0.0
  %v1929 = vadd.f32 %v1927, %v1928
  %v1930 = vsel %vm1643, %v1855, 0.0
  %v1931 = vadd.f32 %v1929, %v1930
  %v1932 = vsel %vm1643, %v1856, 0.0
  %v1933 = vadd.f32 %v1931, %v1932
  %v1934 = vsel %vm1643, %v1857, 0.0
  %v1935 = vadd.f32 %v1933, %v1934
  %v1936 = vsel %vm1643, %v1858, 0.0
  %v1937 = vadd.f32 %v1935, %v1936
  %v1938 = vsel %vm1643, %v1859, 0.0
  %v1939 = vadd.f32 %v1937, %v1938
  %v1940 = vsel %vm1643, %v1860, 0.0
  %v1941 = vadd.f32 %v1939, %v1940
  %v1942 = vsel %vm1643, %v1861, 0.0
  %v1943 = vadd.f32 %v1941, %v1942
  %v1944 = vsel %vm1643, %v1862, 0.0
  %v1945 = vadd.f32 %v1943, %v1944
  %v1946 = vsel %vm1643, %v1863, 0.0
  %v1947 = vadd.f32 %v1945, %v1946
  %v1948 = vsel %vm1643, %v1864, 0.0
  %v1949 = vadd.f32 %v1947, %v1948
  %v1950 = vsel %vm1643, %v1865, 0.0
  %v1951 = vadd.f32 %v1949, %v1950
  %v1952 = vsel %vm1643, %v1866, 0.0
  %v1953 = vadd.f32 %v1951, %v1952
  %v1954 = vsel %vm1643, %v1867, 0.0
  %v1955 = vadd.f32 %v1953, %v1954
  %v1956 = vsel %vm1643, %v1868, 0.0
  %v1957 = vadd.f32 %v1955, %v1956
  %v1958 = vsel %vm1643, %v1869, 0.0
  %v1959 = vadd.f32 %v1957, %v1958
  %v1960 = vsel %vm1643, %v1870, 0.0
  %v1961 = vadd.f32 %v1959, %v1960
  %v1962 = vsel %vm1643, %v1871, 0.0
  %v1963 = vadd.f32 %v1961, %v1962
  %v1964 = vsel %vm1643, %v1872, 0.0
  %v1965 = vadd.f32 %v1963, %v1964
  %v1966 = vsel %vm1643, %v1873, 0.0
  %v1967 = vadd.f32 %v1965, %v1966
  %v1968 = vsel %vm1643, %v1874, 0.0
  %v1969 = vadd.f32 %v1967, %v1968
  %v1970 = vsel %vm1643, %v1875, 0.0
  %v1971 = vadd.f32 %v1969, %v1970
  %v1972 = vsel %vm1643, %v1876, 0.0
  %v1973 = vadd.f32 %v1971, %v1972
  %v1974 = vsel %vm1643, %v1877, 0.0
  %v1975 = vadd.f32 %v1973, %v1974
  %v1976 = vsel %vm1643, %v1878, 0.0
  %v1977 = vadd.f32 %v1975, %v1976
  %v1978 = vsel %vm1643, %v1879, 0.0
  %v1979 = vadd.f32 %v1977, %v1978
  %v1980 = vsel %vm1643, %v1880, 0.0
  %v1981 = vadd.f32 %v1979, %v1980
  %v1982 = vsel %vm1643, %v1881, 0.0
  %v1983 = vadd.f32 %v1981, %v1982
  %v1984 = vsel %vm1643, %v1882, 0.0
  %v1985 = vadd.f32 %v1983, %v1984
  %v1986 = vsel %vm1643, %v1883, 0.0
  %v1987 = vadd.f32 %v1985, %v1986
  %v1988 = vsel %vm1643, %v1884, 0.0
  %v1989 = vadd.f32 %v1987, %v1988
  %v1990 = vsel %vm1643, %v1885, 0.0
  %v1991 = vadd.f32 %v1989, %v1990
  %v1992 = vsel %vm1643, %v1886, 0.0
  %v1993 = vadd.f32 %v1991, %v1992
  %v1994 = vsel %vm1643, %v1887, 0.0
  %v1995 = vadd.f32 %v1993, %v1994
  %v1996 = vsel %vm1643, %v1888, 0.0
  %v1997 = vadd.f32 %v1995, %v1996
  %v1998 = vsel %vm1643, %v1889, 0.0
  %v1999 = vadd.f32 %v1997, %v1998
  %v2000 = vsel %vm1643, %v1890, 0.0
  %v2001 = vadd.f32 %v1999, %v2000
  %v2002 = vsel %vm1643, %v1891, 0.0
  %v2003 = vadd.f32 %v2001, %v2002
  %v2004 = vsel %vm1643, %v1892, 0.0
  %v2005 = vadd.f32 %v2003, %v2004
  %v2006 = vsel %vm1643, %v1893, 0.0
  %v2007 = vadd.f32 %v2005, %v2006
  %v2008 = vsel %vm1643, %v1894, 0.0
  %v2009 = vadd.f32 %v2007, %v2008
  %v2010 = vsel %vm1643, %v1895, 0.0
  %v2011 = vadd.f32 %v2009, %v2010
  %v2012 = vsel %vm1643, %v1896, 0.0
  %v2013 = vadd.f32 %v2011, %v2012
  %v2014 = vsel %vm1643, %v1897, 0.0
  %v2015 = vadd.f32 %v2013, %v2014
  %v2016 = vsel %vm1643, %v1898, 0.0
  %v2017 = vadd.f32 %v2015, %v2016
  %v2018 = vsel %vm1643, %v1899, 0.0
  %v2019 = vadd.f32 %v2017, %v2018
  %v2020 = vsel %vm1643, %v1900, 0.0
  %v2021 = vadd.f32 %v2019, %v2020
  %v2022 = vsel %vm1643, %v1901, 0.0
  %v2023 = vadd.f32 %v2021, %v2022
  %v2024 = vsel %vm1643, %v1902, 0.0
  %v2025 = vadd.f32 %v2023, %v2024
  %v2026 = vsel %vm1643, %v1903, 0.0
  %v2027 = vadd.f32 %v2025, %v2026
  %v2028 = vsel %vm1643, %v1904, 0.0
  %v2029 = vadd.f32 %v2027, %v2028
  %v2030 = vsel %vm1643, %v1905, 0.0
  %v2031 = vadd.f32 %v2029, %v2030
  %v2032 = vsel %vm1643, %v1906, 0.0
  %v2033 = vadd.f32 %v2031, %v2032
  %v2034 = vrot.slane %v2033, 4
  %v2035 = vadd.f32 %v2033, %v2034
  %v2036 = vrot.slane %v2035, 2
  %v2037 = vadd.f32 %v2035, %v2036
  %v2038 = vrot.slane %v2037, 1
  %v2039 = vadd.f32 %v2037, %v2038
  %v2040 = vmul.f32 %v2039, %v1777
  %v2041 = vld [vmem:[%s4] sm:$0x1]
  %v2042 = vadd.f32 %v2040, 1e-05
  %v2043 = vrsqrt.pop %v2042
  %v2044 = vmul.f32 %v2041, %v2043
  %v2045 = vld [vmem:[%s5] sm:$0x1]
  %v2046 = vmul.f32 %v1778, %v2044
  %v2047 = vsub.f32 %v2045, %v2046
  %v2049 = vlaneseq
  %v2050 = vshrl.u32 %v2049, 7
  %v2051 = vsub.s32 0, %v2050
  %v2052 = vrot.slane %v2044, %v2051
  %v2054 = vmul.f32 %v1579, %v2052
  %v2055 = vmul.f32 %v1580, %v2052
  %v2056 = vmul.f32 %v1581, %v2052
  %v2057 = vmul.f32 %v1582, %v2052
  %v2058 = vmul.f32 %v1583, %v2052
  %v2059 = vmul.f32 %v1584, %v2052
  %v2060 = vmul.f32 %v1585, %v2052
  %v2061 = vmul.f32 %v1586, %v2052
  %v2062 = vmul.f32 %v1587, %v2052
  %v2063 = vmul.f32 %v1588, %v2052
  %v2064 = vmul.f32 %v1589, %v2052
  %v2065 = vmul.f32 %v1590, %v2052
  %v2066 = vmul.f32 %v1591, %v2052
  %v2067 = vmul.f32 %v1592, %v2052
  %v2068 = vmul.f32 %v1593, %v2052
  %v2069 = vmul.f32 %v1594, %v2052
  %v2070 = vmul.f32 %v1595, %v2052
  %v2071 = vmul.f32 %v1596, %v2052
  %v2072 = vmul.f32 %v1597, %v2052
  %v2073 = vmul.f32 %v1598, %v2052
  %v2074 = vmul.f32 %v1599, %v2052
  %v2075 = vmul.f32 %v1600, %v2052
  %v2076 = vmul.f32 %v1601, %v2052
  %v2077 = vmul.f32 %v1602, %v2052
  %v2078 = vmul.f32 %v1603, %v2052
  %v2079 = vmul.f32 %v1604, %v2052
  %v2080 = vmul.f32 %v1605, %v2052
  %v2081 = vmul.f32 %v1606, %v2052
  %v2082 = vmul.f32 %v1607, %v2052
  %v2083 = vmul.f32 %v1608, %v2052
  %v2084 = vmul.f32 %v1609, %v2052
  %v2085 = vmul.f32 %v1610, %v2052
  %v2086 = vmul.f32 %v1611, %v2052
  %v2087 = vmul.f32 %v1612, %v2052
  %v2088 = vmul.f32 %v1613, %v2052
  %v2089 = vmul.f32 %v1614, %v2052
  %v2090 = vmul.f32 %v1615, %v2052
  %v2091 = vmul.f32 %v1616, %v2052
  %v2092 = vmul.f32 %v1617, %v2052
  %v2093 = vmul.f32 %v1618, %v2052
  %v2094 = vmul.f32 %v1619, %v2052
  %v2095 = vmul.f32 %v1620, %v2052
  %v2096 = vmul.f32 %v1621, %v2052
  %v2097 = vmul.f32 %v1622, %v2052
  %v2098 = vmul.f32 %v1623, %v2052
  %v2099 = vmul.f32 %v1624, %v2052
  %v2100 = vmul.f32 %v1625, %v2052
  %v2101 = vmul.f32 %v1626, %v2052
  %v2102 = vmul.f32 %v1627, %v2052
  %v2103 = vmul.f32 %v1628, %v2052
  %v2104 = vmul.f32 %v1629, %v2052
  %v2105 = vmul.f32 %v1630, %v2052
  %v2106 = vmul.f32 %v1631, %v2052
  %v2107 = vmul.f32 %v1632, %v2052
  %v2108 = vmul.f32 %v1633, %v2052
  %v2109 = vmul.f32 %v1634, %v2052
  %v2110 = vmul.f32 %v1635, %v2052
  %v2111 = vmul.f32 %v1636, %v2052
  %v2112 = vmul.f32 %v1637, %v2052
  %v2113 = vmul.f32 %v1638, %v2052
  %v2114 = vmul.f32 %v1639, %v2052
  %v2115 = vmul.f32 %v1640, %v2052
  %v2116 = vmul.f32 %v1641, %v2052
  %v2117 = vmul.f32 %v1642, %v2052
  %v2119 = vlaneseq
  %v2120 = vshrl.u32 %v2119, 7
  %v2121 = vsub.s32 0, %v2120
  %v2122 = vrot.slane %v2047, %v2121
  %v2124 = vadd.f32 %v2054, %v2122
  %v2125 = vadd.f32 %v2055, %v2122
  %v2126 = vadd.f32 %v2056, %v2122
  %v2127 = vadd.f32 %v2057, %v2122
  %v2128 = vadd.f32 %v2058, %v2122
  %v2129 = vadd.f32 %v2059, %v2122
  %v2130 = vadd.f32 %v2060, %v2122
  %v2131 = vadd.f32 %v2061, %v2122
  %v2132 = vadd.f32 %v2062, %v2122
  %v2133 = vadd.f32 %v2063, %v2122
  %v2134 = vadd.f32 %v2064, %v2122
  %v2135 = vadd.f32 %v2065, %v2122
  %v2136 = vadd.f32 %v2066, %v2122
  %v2137 = vadd.f32 %v2067, %v2122
  %v2138 = vadd.f32 %v2068, %v2122
  %v2139 = vadd.f32 %v2069, %v2122
  %v2140 = vadd.f32 %v2070, %v2122
  %v2141 = vadd.f32 %v2071, %v2122
  %v2142 = vadd.f32 %v2072, %v2122
  %v2143 = vadd.f32 %v2073, %v2122
  %v2144 = vadd.f32 %v2074, %v2122
  %v2145 = vadd.f32 %v2075, %v2122
  %v2146 = vadd.f32 %v2076, %v2122
  %v2147 = vadd.f32 %v2077, %v2122
  %v2148 = vadd.f32 %v2078, %v2122
  %v2149 = vadd.f32 %v2079, %v2122
  %v2150 = vadd.f32 %v2080, %v2122
  %v2151 = vadd.f32 %v2081, %v2122
  %v2152 = vadd.f32 %v2082, %v2122
  %v2153 = vadd.f32 %v2083, %v2122
  %v2154 = vadd.f32 %v2084, %v2122
  %v2155 = vadd.f32 %v2085, %v2122
  %v2156 = vadd.f32 %v2086, %v2122
  %v2157 = vadd.f32 %v2087, %v2122
  %v2158 = vadd.f32 %v2088, %v2122
  %v2159 = vadd.f32 %v2089, %v2122
  %v2160 = vadd.f32 %v2090, %v2122
  %v2161 = vadd.f32 %v2091, %v2122
  %v2162 = vadd.f32 %v2092, %v2122
  %v2163 = vadd.f32 %v2093, %v2122
  %v2164 = vadd.f32 %v2094, %v2122
  %v2165 = vadd.f32 %v2095, %v2122
  %v2166 = vadd.f32 %v2096, %v2122
  %v2167 = vadd.f32 %v2097, %v2122
  %v2168 = vadd.f32 %v2098, %v2122
  %v2169 = vadd.f32 %v2099, %v2122
  %v2170 = vadd.f32 %v2100, %v2122
  %v2171 = vadd.f32 %v2101, %v2122
  %v2172 = vadd.f32 %v2102, %v2122
  %v2173 = vadd.f32 %v2103, %v2122
  %v2174 = vadd.f32 %v2104, %v2122
  %v2175 = vadd.f32 %v2105, %v2122
  %v2176 = vadd.f32 %v2106, %v2122
  %v2177 = vadd.f32 %v2107, %v2122
  %v2178 = vadd.f32 %v2108, %v2122
  %v2179 = vadd.f32 %v2109, %v2122
  %v2180 = vadd.f32 %v2110, %v2122
  %v2181 = vadd.f32 %v2111, %v2122
  %v2182 = vadd.f32 %v2112, %v2122
  %v2183 = vadd.f32 %v2113, %v2122
  %v2184 = vadd.f32 %v2114, %v2122
  %v2185 = vadd.f32 %v2115, %v2122
  %v2186 = vadd.f32 %v2116, %v2122
  %v2187 = vadd.f32 %v2117, %v2122
  %v2188 = vmax.f32 %v2124, 0.0
  %v2189 = vmax.f32 %v2125, 0.0
  %v2190 = vmax.f32 %v2126, 0.0
  %v2191 = vmax.f32 %v2127, 0.0
  %v2192 = vmax.f32 %v2128, 0.0
  %v2193 = vmax.f32 %v2129, 0.0
  %v2194 = vmax.f32 %v2130, 0.0
  %v2195 = vmax.f32 %v2131, 0.0
  %v2196 = vmax.f32 %v2132, 0.0
  %v2197 = vmax.f32 %v2133, 0.0
  %v2198 = vmax.f32 %v2134, 0.0
  %v2199 = vmax.f32 %v2135, 0.0
  %v2200 = vmax.f32 %v2136, 0.0
  %v2201 = vmax.f32 %v2137, 0.0
  %v2202 = vmax.f32 %v2138, 0.0
  %v2203 = vmax.f32 %v2139, 0.0
  %v2204 = vmax.f32 %v2140, 0.0
  %v2205 = vmax.f32 %v2141, 0.0
  %v2206 = vmax.f32 %v2142, 0.0
  %v2207 = vmax.f32 %v2143, 0.0
  %v2208 = vmax.f32 %v2144, 0.0
  %v2209 = vmax.f32 %v2145, 0.0
  %v2210 = vmax.f32 %v2146, 0.0
  %v2211 = vmax.f32 %v2147, 0.0
  %v2212 = vmax.f32 %v2148, 0.0
  %v2213 = vmax.f32 %v2149, 0.0
  %v2214 = vmax.f32 %v2150, 0.0
  %v2215 = vmax.f32 %v2151, 0.0
  %v2216 = vmax.f32 %v2152, 0.0
  %v2217 = vmax.f32 %v2153, 0.0
  %v2218 = vmax.f32 %v2154, 0.0
  %v2219 = vmax.f32 %v2155, 0.0
  %v2220 = vmax.f32 %v2156, 0.0
  %v2221 = vmax.f32 %v2157, 0.0
  %v2222 = vmax.f32 %v2158, 0.0
  %v2223 = vmax.f32 %v2159, 0.0
  %v2224 = vmax.f32 %v2160, 0.0
  %v2225 = vmax.f32 %v2161, 0.0
  %v2226 = vmax.f32 %v2162, 0.0
  %v2227 = vmax.f32 %v2163, 0.0
  %v2228 = vmax.f32 %v2164, 0.0
  %v2229 = vmax.f32 %v2165, 0.0
  %v2230 = vmax.f32 %v2166, 0.0
  %v2231 = vmax.f32 %v2167, 0.0
  %v2232 = vmax.f32 %v2168, 0.0
  %v2233 = vmax.f32 %v2169, 0.0
  %v2234 = vmax.f32 %v2170, 0.0
  %v2235 = vmax.f32 %v2171, 0.0
  %v2236 = vmax.f32 %v2172, 0.0
  %v2237 = vmax.f32 %v2173, 0.0
  %v2238 = vmax.f32 %v2174, 0.0
  %v2239 = vmax.f32 %v2175, 0.0
  %v2240 = vmax.f32 %v2176, 0.0
  %v2241 = vmax.f32 %v2177, 0.0
  %v2242 = vmax.f32 %v2178, 0.0
  %v2243 = vmax.f32 %v2179, 0.0
  %v2244 = vmax.f32 %v2180, 0.0
  %v2245 = vmax.f32 %v2181, 0.0
  %v2246 = vmax.f32 %v2182, 0.0
  %v2247 = vmax.f32 %v2183, 0.0
  %v2248 = vmax.f32 %v2184, 0.0
  %v2249 = vmax.f32 %v2185, 0.0
  %v2250 = vmax.f32 %v2186, 0.0
  %v2251 = vmax.f32 %v2187, 0.0
  %2252 = vst.msk [vmem:[%s6] sm:$0xff] %vm1643, %v2188
  %2253 = vst.msk [vmem:[%s6 + $0x8] sm:$0xff] %vm1643, %v2189
  %2254 = vst.msk [vmem:[%s6 + $0x10] sm:$0xff] %vm1643, %v2190
  %2255 = vst.msk [vmem:[%s6 + $0x18] sm:$0xff] %vm1643, %v2191
  %2256 = vst.msk [vmem:[%s6 + $0x20] sm:$0xff] %vm1643, %v2192
  %2257 = vst.msk [vmem:[%s6 + $0x28] sm:$0xff] %vm1643, %v2193
  %2258 = vst.msk [vmem:[%s6 + $0x30] sm:$0xff] %vm1643, %v2194
  %2259 = vst.msk [vmem:[%s6 + $0x38] sm:$0xff] %vm1643, %v2195
  %2260 = vst.msk [vmem:[%s6 + $0x40] sm:$0xff] %vm1643, %v2196
  %2261 = vst.msk [vmem:[%s6 + $0x48] sm:$0xff] %vm1643, %v2197
  %2262 = vst.msk [vmem:[%s6 + $0x50] sm:$0xff] %vm1643, %v2198
  %2263 = vst.msk [vmem:[%s6 + $0x58] sm:$0xff] %vm1643, %v2199
  %2264 = vst.msk [vmem:[%s6 + $0x60] sm:$0xff] %vm1643, %v2200
  %2265 = vst.msk [vmem:[%s6 + $0x68] sm:$0xff] %vm1643, %v2201
  %2266 = vst.msk [vmem:[%s6 + $0x70] sm:$0xff] %vm1643, %v2202
  %2267 = vst.msk [vmem:[%s6 + $0x78] sm:$0xff] %vm1643, %v2203
  %2268 = vst.msk [vmem:[%s6 + $0x80] sm:$0xff] %vm1643, %v2204
  %2269 = vst.msk [vmem:[%s6 + $0x88] sm:$0xff] %vm1643, %v2205
  %2270 = vst.msk [vmem:[%s6 + $0x90] sm:$0xff] %vm1643, %v2206
  %2271 = vst.msk [vmem:[%s6 + $0x98] sm:$0xff] %vm1643, %v2207
  %2272 = vst.msk [vmem:[%s6 + $0xa0] sm:$0xff] %vm1643, %v2208
  %2273 = vst.msk [vmem:[%s6 + $0xa8] sm:$0xff] %vm1643, %v2209
  %2274 = vst.msk [vmem:[%s6 + $0xb0] sm:$0xff] %vm1643, %v2210
  %2275 = vst.msk [vmem:[%s6 + $0xb8] sm:$0xff] %vm1643, %v2211
  %2276 = vst.msk [vmem:[%s6 + $0xc0] sm:$0xff] %vm1643, %v2212
  %2277 = vst.msk [vmem:[%s6 + $0xc8] sm:$0xff] %vm1643, %v2213
  %2278 = vst.msk [vmem:[%s6 + $0xd0] sm:$0xff] %vm1643, %v2214
  %2279 = vst.msk [vmem:[%s6 + $0xd8] sm:$0xff] %vm1643, %v2215
  %2280 = vst.msk [vmem:[%s6 + $0xe0] sm:$0xff] %vm1643, %v2216
  %2281 = vst.msk [vmem:[%s6 + $0xe8] sm:$0xff] %vm1643, %v2217
  %2282 = vst.msk [vmem:[%s6 + $0xf0] sm:$0xff] %vm1643, %v2218
  %2283 = vst.msk [vmem:[%s6 + $0xf8] sm:$0xff] %vm1643, %v2219
  %2284 = vst.msk [vmem:[%s6 + $0x100] sm:$0xff] %vm1643, %v2220
  %2285 = vst.msk [vmem:[%s6 + $0x108] sm:$0xff] %vm1643, %v2221
  %2286 = vst.msk [vmem:[%s6 + $0x110] sm:$0xff] %vm1643, %v2222
  %2287 = vst.msk [vmem:[%s6 + $0x118] sm:$0xff] %vm1643, %v2223
  %2288 = vst.msk [vmem:[%s6 + $0x120] sm:$0xff] %vm1643, %v2224
  %2289 = vst.msk [vmem:[%s6 + $0x128] sm:$0xff] %vm1643, %v2225
  %2290 = vst.msk [vmem:[%s6 + $0x130] sm:$0xff] %vm1643, %v2226
  %2291 = vst.msk [vmem:[%s6 + $0x138] sm:$0xff] %vm1643, %v2227
  %2292 = vst.msk [vmem:[%s6 + $0x140] sm:$0xff] %vm1643, %v2228
  %2293 = vst.msk [vmem:[%s6 + $0x148] sm:$0xff] %vm1643, %v2229
  %2294 = vst.msk [vmem:[%s6 + $0x150] sm:$0xff] %vm1643, %v2230
  %2295 = vst.msk [vmem:[%s6 + $0x158] sm:$0xff] %vm1643, %v2231
  %2296 = vst.msk [vmem:[%s6 + $0x160] sm:$0xff] %vm1643, %v2232
  %2297 = vst.msk [vmem:[%s6 + $0x168] sm:$0xff] %vm1643, %v2233
  %2298 = vst.msk [vmem:[%s6 + $0x170] sm:$0xff] %vm1643, %v2234
  %2299 = vst.msk [vmem:[%s6 + $0x178] sm:$0xff] %vm1643, %v2235
  %2300 = vst.msk [vmem:[%s6 + $0x180] sm:$0xff] %vm1643, %v2236
  %2301 = vst.msk [vmem:[%s6 + $0x188] sm:$0xff] %vm1643, %v2237
  %2302 = vst.msk [vmem:[%s6 + $0x190] sm:$0xff] %vm1643, %v2238
  %2303 = vst.msk [vmem:[%s6 + $0x198] sm:$0xff] %vm1643, %v2239
  %2304 = vst.msk [vmem:[%s6 + $0x1a0] sm:$0xff] %vm1643, %v2240
  %2305 = vst.msk [vmem:[%s6 + $0x1a8] sm:$0xff] %vm1643, %v2241
  %2306 = vst.msk [vmem:[%s6 + $0x1b0] sm:$0xff] %vm1643, %v2242
  %2307 = vst.msk [vmem:[%s6 + $0x1b8] sm:$0xff] %vm1643, %v2243
  %2308 = vst.msk [vmem:[%s6 + $0x1c0] sm:$0xff] %vm1643, %v2244
  %2309 = vst.msk [vmem:[%s6 + $0x1c8] sm:$0xff] %vm1643, %v2245
  %2310 = vst.msk [vmem:[%s6 + $0x1d0] sm:$0xff] %vm1643, %v2246
  %2311 = vst.msk [vmem:[%s6 + $0x1d8] sm:$0xff] %vm1643, %v2247
  %2312 = vst.msk [vmem:[%s6 + $0x1e0] sm:$0xff] %vm1643, %v2248
  %2313 = vst.msk [vmem:[%s6 + $0x1e8] sm:$0xff] %vm1643, %v2249
  %2314 = vst.msk [vmem:[%s6 + $0x1f0] sm:$0xff] %vm1643, %v2250
  %2315 = vst.msk [vmem:[%s6 + $0x1f8] sm:$0xff] %vm1643, %v2251
  // Predicated region
  $region26: #{tpu_custom_call.1} parent=0 // pred_check
    _
  $region27: #{tpu_custom_call.1} parent=0 // pred_check_branch
    %2317 = sbr.rel (0) target = $region29
  $region28: #{tpu_custom_call.1} parent=0 // pred_region
    _
  $region29: #{tpu_custom_call.1} parent=0 // pred_fallthru
    _
  // Predicated region
  $region30: #{tpu_custom_call.1} parent=0 // pred_check
    _
  $region31: #{tpu_custom_call.1} parent=0 // pred_check_branch
    %2319 = sbr.rel (0) target = $region33
  $region32: #{tpu_custom_call.1} parent=0 // pred_region
    _
  $region33: #{tpu_custom_call.1} parent=0 // pred_fallthru
    _

</llo_original>
